<compile_context>
chip_gen: v7x
topology: tpu7x:2x2x1
jax: 0.10.0
libtpu: 0.0.40
codegen_flags: <defaults>
</compile_context>

<pallas_src>
import numpy as np
import jax
import jax.numpy as jnp
from jax.experimental import pallas as pl
from jax.experimental.pallas import tpu as pltpu


# ----------------------------------------------------------------------------
# Host-side constant operators
# ----------------------------------------------------------------------------
def _bilinear_upsample_matrix(n_in: int) -> np.ndarray:
    """1-D interpolation matrix matching F.interpolate(scale_factor=2,
    mode='bilinear', align_corners=False): out = A @ in, A: [2*n_in, n_in]."""
    n_out = 2 * n_in
    A = np.zeros((n_out, n_in), dtype=np.float32)
    for o in range(n_out):
        src = max((o + 0.5) * 0.5 - 0.5, 0.0)
        i0 = int(np.floor(src))
        frac = src - i0
        i1 = min(i0 + 1, n_in - 1)
        A[o, i0] += 1.0 - frac
        A[o, i1] += frac
    return A


def _upsample_operator(Hp: int, Wp: int) -> np.ndarray:
    """[Hp*Wp, H*W] operator U such that ms_up_flat = ms_low_flat @ U
    (separable bilinear x2, PyTorch align_corners=False semantics)."""
    Ah = _bilinear_upsample_matrix(Hp)   # [H, Hp]
    Aw = _bilinear_upsample_matrix(Wp)   # [W, Wp]
    return np.kron(Ah.T, Aw.T).astype(np.float32)


def _dwt_selection_matrices(H: int, W: int) -> np.ndarray:
    """0/1 selection matrices P of shape [4, H*W, Hp*Wp] so that, per channel,
        a_m = x_flat @ P[m]
    reproduces EXACTLY the module's dwt_decompose() maps, i.e. the sequence
    F.unfold(k=2, s=2) -> .view(-1, 2, 2) -> pick (i, j) -> .view(B, C, Hp, Wp).
    (The .view(-1,2,2) re-flattening scrambles spatial positions; that exact
    permutation is baked into P here.)
    # TODO(synk): for large H*W replace this O((H*W)^2) operator with an
    # in-kernel XLU roll/select de-interleave.
    """
    Hp, Wp = H // 2, W // 2
    L = Hp * Wp
    P = np.zeros((4, H * W, L), dtype=np.float32)
    for m in range(4):
        for j in range(L):
            F = 4 * j + m              # flat offset inside the [4, L] unfold block
            k, l = divmod(F, L)        # kernel-element index, patch index
            pp, qq = divmod(l, Wp)     # patch row / col
            ki, kj = divmod(k, 2)      # offset inside the 2x2 patch
            hw = (2 * pp + ki) * W + (2 * qq + kj)
            P[m, hw, j] = 1.0
    return P


# ----------------------------------------------------------------------------
# Pallas kernel
# ----------------------------------------------------------------------------
def _dwa_kernel(x_ref, psel_ref, ups_ref, w1t_ref, b1_ref, w2t_ref, b2_ref,
                cw_ref, cb_ref, out_ref):
    Bb, C, HW = x_ref.shape
    L = psel_ref.shape[2]

    # Single upcast; all in-kernel math stays in f32 (v5e has no bf16 VPU path).
    x = x_ref[...].astype(jnp.float32)               # [Bb, C, HW], HW lane-dense
    x2d = x.reshape(Bb * C, HW)

    # --- wavelet "corners" (exact module semantics) via selection matmuls ----
    a0 = jnp.dot(x2d, psel_ref[0], preferred_element_type=jnp.float32)  # LL-ish
    a1 = jnp.dot(x2d, psel_ref[1], preferred_element_type=jnp.float32)
    a2 = jnp.dot(x2d, psel_ref[2], preferred_element_type=jnp.float32)
    a3 = jnp.dot(x2d, psel_ref[3], preferred_element_type=jnp.float32)
    d1 = a1 - a0                                     # LH   [Bb*C, L]
    d2 = a2 - a0                                     # HL
    d3 = a3 - a0                                     # HH

    # --- channel attention: Wc = mean(LL+LH+HL+HH) = mean(a1+a2+a3-2*a0) -----
    s = (d1 + d2 + d3 + a0).reshape(Bb, C, L)
    wc = jnp.sum(s, axis=-1) * (1.0 / L)             # [Bb, C]  (lane reduce)
    h = jnp.dot(wc, w1t_ref[...], preferred_element_type=jnp.float32) + b1_ref[...]
    h = jnp.maximum(h, 0.0)                          # [Bb, Cr]
    mc = jax.nn.sigmoid(
        jnp.dot(h, w2t_ref[...], preferred_element_type=jnp.float32) + b2_ref[...])  # [Bb, C]

    # --- spatial attention over the 3C high-frequency maps -------------------
    dsum = (d1 + d2 + d3).reshape(Bb, C, L)
    dmax = jnp.maximum(jnp.maximum(d1, d2), d3).reshape(Bb, C, L)
    avg_p = jnp.sum(dsum, axis=1) * (1.0 / (3.0 * C))        # [Bb, L]
    max_p = jnp.max(dmax, axis=1)                            # [Bb, L]
    ms_low = jax.nn.sigmoid(cw_ref[0] * avg_p + cw_ref[1] * max_p + cb_ref[0])

    # --- x2 bilinear upsample: one lane-dense batched matmul -----------------
    ms = jnp.dot(ms_low, ups_ref[...], preferred_element_type=jnp.float32)   # [Bb, HW]

    out_ref[...] = (x * mc[:, :, None] * ms[:, None, :]).astype(out_ref.dtype)


# ----------------------------------------------------------------------------
# Wrapper
# ----------------------------------------------------------------------------
def _pick_block_batch(B, C, HW, itemsize, budget_bytes=2 << 20):
    divisors = [d for d in range(1, B + 1) if B % d == 0]
    fits = [d for d in divisors if d * C * HW * itemsize <= budget_bytes] or [1]
    multi = [d for d in fits if B // d >= 2]      # keep >=2 grid steps (v7x: 2 TCs)
    return max(multi) if multi else max(fits)


def dual_wavelet_attention(x, params, block_batch=None):
    B, C, H, W = x.shape
    assert H % 2 == 0 and W % 2 == 0, "DWT decomposition requires even H and W"
    Hp, Wp = H // 2, W // 2
    HW, L = H * W, Hp * Wp

    bb = block_batch or _pick_block_batch(B, C, HW, x.dtype.itemsize)
    assert B % bb == 0

    x_flat = x.reshape(B, C, HW)                               # lane-dense layout

    psel = jnp.asarray(_dwt_selection_matrices(H, W))           # [4, HW, L]
    ups = jnp.asarray(_upsample_operator(Hp, Wp))               # [L, HW]

    w1t = params["w1"].T.astype(jnp.float32)                    # [C, Cr]
    b1 = params["b1"].reshape(1, -1).astype(jnp.float32)        # [1, Cr]
    w2t = params["w2"].T.astype(jnp.float32)                    # [Cr, C]
    b2 = params["b2"].reshape(1, -1).astype(jnp.float32)        # [1, C]
    cw = params["conv_w"].reshape(2).astype(jnp.float32)        # (w_avg, w_max)
    cb = params["conv_b"].reshape(1).astype(jnp.float32)
    Cr = w1t.shape[1]

    const = lambda shp: pl.BlockSpec(shp, lambda b, _s=shp: (0,) * len(_s))
    smem = pl.BlockSpec(memory_space=pltpu.MemorySpace.SMEM)

    out = pl.pallas_call(
        _dwa_kernel,
        out_shape=jax.ShapeDtypeStruct((B, C, HW), x.dtype),
        grid=(B // bb,),
        in_specs=[
            pl.BlockSpec((bb, C, HW), lambda b: (b, 0, 0)),     # x (read once)
            const((4, HW, L)),                                  # DWT selection
            const((L, HW)),                                     # upsample operator
            const((C, Cr)), const((1, Cr)),                     # fc1
            const((Cr, C)), const((1, C)),                      # fc2
            smem, smem,                                         # 1x1 conv w, b
        ],
        out_specs=pl.BlockSpec((bb, C, HW), lambda b: (b, 0, 0)),
        compiler_params=pltpu.CompilerParams(
            dimension_semantics=("parallel",),
            vmem_limit_bytes=32 * 1024 * 1024),
    )(x_flat, psel, ups, w1t, b1, w2t, b2, cw, cb)

    return out.reshape(B, C, H, W)


# ----------------------------------------------------------------------------
# Pure-JAX reference (mirrors the PyTorch forward, incl. the unfold/view scramble)
# ----------------------------------------------------------------------------
def _dwt_corners(x):
    B, C, H, W = x.shape
    Hp, Wp = H // 2, W // 2
    L = Hp * Wp
    u = x.reshape(B * C, Hp, 2, Wp, 2).transpose(0, 2, 4, 1, 3).reshape(B * C, 4, L)
    v = u.reshape(-1, 2, 2)                    # same row-major flattening as torch .view
    a00 = v[:, 0, 0].reshape(B, C, Hp, Wp)
    a01 = v[:, 0, 1].reshape(B, C, Hp, Wp)
    a10 = v[:, 1, 0].reshape(B, C, Hp, Wp)
    a11 = v[:, 1, 1].reshape(B, C, Hp, Wp)
    return a00, a01, a10, a11


def reference(x, params):
    B, C, H, W = x.shape
    Hp, Wp = H // 2, W // 2
    a00, a01, a10, a11 = _dwt_corners(x)
    LL, LH, HL, HH = a00, a01 - a00, a10 - a00, a11 - a00
    Wc = jnp.mean(LL + LH + HL + HH, axis=(2, 3))
    h = jax.nn.relu(Wc @ params["w1"].T + params["b1"])
    Mc = jax.nn.sigmoid(h @ params["w2"].T + params["b2"])
    x_s = x * Mc[:, :, None, None]
    Ws_high = jnp.concatenate([LH, HL, HH], axis=1)
    avg_p = jnp.mean(Ws_high, axis=1, keepdims=True)
    max_p = jnp.max(Ws_high, axis=1, keepdims=True)
    w = params["conv_w"].reshape(2)
    Ms = jax.nn.sigmoid(w[0] * avg_p + w[1] * max_p + params["conv_b"].reshape(1)[0])
    A_h = jnp.asarray(_bilinear_upsample_matrix(Hp))
    A_w = jnp.asarray(_bilinear_upsample_matrix(Wp))
    Ms_up = jnp.einsum("hp,bopq,wq->bohw", A_h, Ms, A_w)
    return x_s * Ms_up


if __name__ == "__main__":
    B, C, H, W = 8, 32, 16, 16
    reduction = 16
    Cr = C // reduction

    key = jax.random.PRNGKey(0)
    kx, k1, k2, k3, k4, k5, k6 = jax.random.split(key, 7)
    x = jax.random.normal(kx, (B, C, H, W), jnp.float32)
    params = dict(
        w1=0.2 * jax.random.normal(k1, (Cr, C), jnp.float32),           # fc[0].weight
        b1=0.1 * jax.random.normal(k2, (Cr,), jnp.float32),             # fc[0].bias
        w2=0.2 * jax.random.normal(k3, (C, Cr), jnp.float32),           # fc[2].weight
        b2=0.1 * jax.random.normal(k4, (C,), jnp.float32),              # fc[2].bias
        conv_w=0.5 * jax.random.normal(k5, (1, 2, 1, 1), jnp.float32),  # conv[0].weight
        conv_b=0.1 * jax.random.normal(k6, (1,), jnp.float32),          # conv[0].bias
    )

    out = jax.block_until_ready(dual_wavelet_attention(x, params))
    ref = jax.block_until_ready(reference(x, params))
    assert out.shape == (B, C, H, W)
    err = float(jnp.max(jnp.abs(out - ref)))
    assert err < 1e-3, f"max abs err {err}"
    print("KERNEL_OK")
</pallas_src>

<mosaic_0001>
module attributes {stable_mosaic.version = 11 : i64} {
  func.func @_dwa_kernel(%arg0: i32, %arg1: memref<4x32x256xf32, #tpu.memory_space<vmem>>, %arg2: memref<4x256x64xf32, #tpu.memory_space<vmem>>, %arg3: memref<64x256xf32, #tpu.memory_space<vmem>>, %arg4: memref<32x2xf32, #tpu.memory_space<vmem>>, %arg5: memref<1x2xf32, #tpu.memory_space<vmem>>, %arg6: memref<2x32xf32, #tpu.memory_space<vmem>>, %arg7: memref<1x32xf32, #tpu.memory_space<vmem>>, %arg8: memref<2xf32, #tpu.memory_space<smem>>, %arg9: memref<1xf32, #tpu.memory_space<smem>>, %arg10: memref<4x32x256xf32, #tpu.memory_space<vmem>>) attributes {dimension_semantics = [#tpu.dimension_semantics<parallel>], iteration_bounds = array<i64: 2>, scalar_prefetch = 0 : i64, scratch_operands = 0 : i64, tpu.core_type = #tpu.core_type<tc>, window_params = [{transform_indices = @transform_0, window_bounds = array<i64: 4, 32, 256>}, {pipeline_mode = #tpu.pipeline_mode<synchronous>, transform_indices = @transform_1, window_bounds = array<i64: 4, 256, 64>}, {pipeline_mode = #tpu.pipeline_mode<synchronous>, transform_indices = @transform_2, window_bounds = array<i64: 64, 256>}, {pipeline_mode = #tpu.pipeline_mode<synchronous>, transform_indices = @transform_3, window_bounds = array<i64: 32, 2>}, {pipeline_mode = #tpu.pipeline_mode<synchronous>, transform_indices = @transform_4, window_bounds = array<i64: 1, 2>}, {pipeline_mode = #tpu.pipeline_mode<synchronous>, transform_indices = @transform_5, window_bounds = array<i64: 2, 32>}, {pipeline_mode = #tpu.pipeline_mode<synchronous>, transform_indices = @transform_6, window_bounds = array<i64: 1, 32>}, {transform_indices = @transform_7, window_bounds = array<i64: 2>}, {transform_indices = @transform_8, window_bounds = array<i64: 1>}, {transform_indices = @transform_9, window_bounds = array<i64: 4, 32, 256>}]} {
    %c0 = arith.constant 0 : index
    %c0_0 = arith.constant 0 : index
    %c0_1 = arith.constant 0 : index
    %0 = vector.load %arg1[%c0, %c0_0, %c0_1] : memref<4x32x256xf32, #tpu.memory_space<vmem>>, vector<4x32x256xf32>
    %1 = vector.shape_cast %0 : vector<4x32x256xf32> to vector<128x256xf32>
    %c0_2 = arith.constant 0 : index
    %c0_3 = arith.constant 0 : index
    %c0_4 = arith.constant 0 : index
    %2 = vector.load %arg2[%c0_2, %c0_3, %c0_4] : memref<4x256x64xf32, #tpu.memory_space<vmem>>, vector<1x256x64xf32>
    %3 = vector.shape_cast %2 : vector<1x256x64xf32> to vector<256x64xf32>
    %cst = arith.constant dense<0.000000e+00> : vector<128x64xf32>
    %4 = tpu.matmul %1, %3, %cst {dimension_numbers = #tpu.dot_dimension_numbers<[1], [0], [0], [1], [0, 0, 1, 1], [], []>} : vector<128x256xf32>, vector<256x64xf32>, vector<128x64xf32> -> vector<128x64xf32>
    %c1 = arith.constant 1 : index
    %c0_5 = arith.constant 0 : index
    %c0_6 = arith.constant 0 : index
    %5 = vector.load %arg2[%c1, %c0_5, %c0_6] : memref<4x256x64xf32, #tpu.memory_space<vmem>>, vector<1x256x64xf32>
    %6 = vector.shape_cast %5 : vector<1x256x64xf32> to vector<256x64xf32>
    %cst_7 = arith.constant dense<0.000000e+00> : vector<128x64xf32>
    %7 = tpu.matmul %1, %6, %cst_7 {dimension_numbers = #tpu.dot_dimension_numbers<[1], [0], [0], [1], [0, 0, 1, 1], [], []>} : vector<128x256xf32>, vector<256x64xf32>, vector<128x64xf32> -> vector<128x64xf32>
    %c2 = arith.constant 2 : index
    %c0_8 = arith.constant 0 : index
    %c0_9 = arith.constant 0 : index
    %8 = vector.load %arg2[%c2, %c0_8, %c0_9] : memref<4x256x64xf32, #tpu.memory_space<vmem>>, vector<1x256x64xf32>
    %9 = vector.shape_cast %8 : vector<1x256x64xf32> to vector<256x64xf32>
    %cst_10 = arith.constant dense<0.000000e+00> : vector<128x64xf32>
    %10 = tpu.matmul %1, %9, %cst_10 {dimension_numbers = #tpu.dot_dimension_numbers<[1], [0], [0], [1], [0, 0, 1, 1], [], []>} : vector<128x256xf32>, vector<256x64xf32>, vector<128x64xf32> -> vector<128x64xf32>
    %c3 = arith.constant 3 : index
    %c0_11 = arith.constant 0 : index
    %c0_12 = arith.constant 0 : index
    %11 = vector.load %arg2[%c3, %c0_11, %c0_12] : memref<4x256x64xf32, #tpu.memory_space<vmem>>, vector<1x256x64xf32>
    %12 = vector.shape_cast %11 : vector<1x256x64xf32> to vector<256x64xf32>
    %cst_13 = arith.constant dense<0.000000e+00> : vector<128x64xf32>
    %13 = tpu.matmul %1, %12, %cst_13 {dimension_numbers = #tpu.dot_dimension_numbers<[1], [0], [0], [1], [0, 0, 1, 1], [], []>} : vector<128x256xf32>, vector<256x64xf32>, vector<128x64xf32> -> vector<128x64xf32>
    %14 = arith.subf %7, %4 : vector<128x64xf32>
    %15 = arith.subf %10, %4 : vector<128x64xf32>
    %16 = arith.subf %13, %4 : vector<128x64xf32>
    %17 = arith.addf %14, %15 : vector<128x64xf32>
    %18 = arith.addf %17, %16 : vector<128x64xf32>
    %19 = arith.addf %18, %4 : vector<128x64xf32>
    %20 = vector.shape_cast %19 : vector<128x64xf32> to vector<4x32x64xf32>
    %cst_14 = arith.constant dense<0.000000e+00> : vector<4x32xf32>
    %21 = vector.multi_reduction <add>, %20, %cst_14 [2] : vector<4x32x64xf32> to vector<4x32xf32>
    %cst_15 = arith.constant 1.562500e-02 : f32
    %22 = vector.broadcast %cst_15 : f32 to vector<4x32xf32>
    %23 = arith.mulf %21, %22 : vector<4x32xf32>
    %c0_16 = arith.constant 0 : index
    %c0_17 = arith.constant 0 : index
    %24 = vector.load %arg4[%c0_16, %c0_17] : memref<32x2xf32, #tpu.memory_space<vmem>>, vector<32x2xf32>
    %cst_18 = arith.constant dense<0.000000e+00> : vector<4x2xf32>
    %25 = tpu.matmul %23, %24, %cst_18 {dimension_numbers = #tpu.dot_dimension_numbers<[1], [0], [0], [1], [0, 0, 1, 1], [], []>} : vector<4x32xf32>, vector<32x2xf32>, vector<4x2xf32> -> vector<4x2xf32>
    %c0_19 = arith.constant 0 : index
    %c0_20 = arith.constant 0 : index
    %26 = vector.load %arg5[%c0_19, %c0_20] : memref<1x2xf32, #tpu.memory_space<vmem>>, vector<1x2xf32>
    %27 = vector.broadcast %26 : vector<1x2xf32> to vector<4x2xf32>
    %28 = arith.addf %25, %27 : vector<4x2xf32>
    %cst_21 = arith.constant 0.000000e+00 : f32
    %29 = vector.broadcast %cst_21 : f32 to vector<4x2xf32>
    %30 = arith.maximumf %28, %29 : vector<4x2xf32>
    %c0_22 = arith.constant 0 : index
    %c0_23 = arith.constant 0 : index
    %31 = vector.load %arg6[%c0_22, %c0_23] : memref<2x32xf32, #tpu.memory_space<vmem>>, vector<2x32xf32>
    %cst_24 = arith.constant dense<0.000000e+00> : vector<4x32xf32>
    %32 = tpu.matmul %30, %31, %cst_24 {dimension_numbers = #tpu.dot_dimension_numbers<[1], [0], [0], [1], [0, 0, 1, 1], [], []>} : vector<4x2xf32>, vector<2x32xf32>, vector<4x32xf32> -> vector<4x32xf32>
    %c0_25 = arith.constant 0 : index
    %c0_26 = arith.constant 0 : index
    %33 = vector.load %arg7[%c0_25, %c0_26] : memref<1x32xf32, #tpu.memory_space<vmem>>, vector<1x32xf32>
    %34 = vector.broadcast %33 : vector<1x32xf32> to vector<4x32xf32>
    %35 = arith.addf %32, %34 : vector<4x32xf32>
    %36 = arith.negf %35 : vector<4x32xf32>
    %37 = math.exp %36 : vector<4x32xf32>
    %cst_27 = arith.constant 1.000000e+00 : f32
    %38 = vector.broadcast %cst_27 : f32 to vector<4x32xf32>
    %39 = arith.addf %38, %37 : vector<4x32xf32>
    %40 = arith.divf %38, %39 : vector<4x32xf32>
    %41 = arith.addf %14, %15 : vector<128x64xf32>
    %42 = arith.addf %41, %16 : vector<128x64xf32>
    %43 = vector.shape_cast %42 : vector<128x64xf32> to vector<4x32x64xf32>
    %44 = arith.maximumf %14, %15 : vector<128x64xf32>
    %45 = arith.maximumf %44, %16 : vector<128x64xf32>
    %46 = vector.shape_cast %45 : vector<128x64xf32> to vector<4x32x64xf32>
    %cst_28 = arith.constant dense<0.000000e+00> : vector<4x64xf32>
    %47 = vector.multi_reduction <add>, %43, %cst_28 [1] : vector<4x32x64xf32> to vector<4x64xf32>
    %cst_29 = arith.constant 0.010416667 : f32
    %48 = vector.broadcast %cst_29 : f32 to vector<4x64xf32>
    %49 = arith.mulf %47, %48 : vector<4x64xf32>
    %cst_30 = arith.constant dense<0xFF800000> : vector<4x64xf32>
    %50 = vector.multi_reduction <maximumf>, %46, %cst_30 [1] : vector<4x32x64xf32> to vector<4x64xf32>
    %c0_31 = arith.constant 0 : index
    %51 = memref.load %arg8[%c0_31] : memref<2xf32, #tpu.memory_space<smem>>
    %52 = vector.broadcast %51 : f32 to vector<4x64xf32>
    %53 = arith.mulf %52, %49 : vector<4x64xf32>
    %c1_32 = arith.constant 1 : index
    %54 = memref.load %arg8[%c1_32] : memref<2xf32, #tpu.memory_space<smem>>
    %55 = vector.broadcast %54 : f32 to vector<4x64xf32>
    %56 = arith.mulf %55, %50 : vector<4x64xf32>
    %57 = arith.addf %53, %56 : vector<4x64xf32>
    %c0_33 = arith.constant 0 : index
    %58 = memref.load %arg9[%c0_33] : memref<1xf32, #tpu.memory_space<smem>>
    %59 = vector.broadcast %58 : f32 to vector<4x64xf32>
    %60 = arith.addf %57, %59 : vector<4x64xf32>
    %61 = arith.negf %60 : vector<4x64xf32>
    %62 = math.exp %61 : vector<4x64xf32>
    %cst_34 = arith.constant 1.000000e+00 : f32
    %63 = vector.broadcast %cst_34 : f32 to vector<4x64xf32>
    %64 = arith.addf %63, %62 : vector<4x64xf32>
    %65 = arith.divf %63, %64 : vector<4x64xf32>
    %c0_35 = arith.constant 0 : index
    %c0_36 = arith.constant 0 : index
    %66 = vector.load %arg3[%c0_35, %c0_36] : memref<64x256xf32, #tpu.memory_space<vmem>>, vector<64x256xf32>
    %cst_37 = arith.constant dense<0.000000e+00> : vector<4x256xf32>
    %67 = tpu.matmul %65, %66, %cst_37 {dimension_numbers = #tpu.dot_dimension_numbers<[1], [0], [0], [1], [0, 0, 1, 1], [], []>} : vector<4x64xf32>, vector<64x256xf32>, vector<4x256xf32> -> vector<4x256xf32>
    %68 = vector.shape_cast %40 : vector<4x32xf32> to vector<4x32x1xf32>
    %69 = vector.broadcast %68 : vector<4x32x1xf32> to vector<4x32x256xf32>
    %70 = arith.mulf %0, %69 : vector<4x32x256xf32>
    %71 = vector.shape_cast %67 : vector<4x256xf32> to vector<4x1x256xf32>
    %72 = vector.broadcast %71 : vector<4x1x256xf32> to vector<4x32x256xf32>
    %73 = arith.mulf %70, %72 : vector<4x32x256xf32>
    %c0_38 = arith.constant 0 : index
    %c0_39 = arith.constant 0 : index
    %c0_40 = arith.constant 0 : index
    %74 = vector.load %arg10[%c0_38, %c0_39, %c0_40] : memref<4x32x256xf32, #tpu.memory_space<vmem>>, vector<4x32x256xf32>
    tpu.vector_store %arg10[%c0_38, %c0_39, %c0_40], %73 {strides = array<i32>} : memref<4x32x256xf32, #tpu.memory_space<vmem>>, vector<4x32x256xf32>,
    return
  }
  func.func @transform_0(%arg0: i32) -> (i32, i32, i32) {
    %c0_i32 = arith.constant 0 : i32
    %c0_i32_0 = arith.constant 0 : i32
    %c0_i32_1 = arith.constant 0 : i32
    return %arg0, %c0_i32, %c0_i32_0 : i32, i32, i32
  }
  func.func @transform_1(%arg0: i32) -> (i32, i32, i32) {
    %c0_i32 = arith.constant 0 : i32
    %c0_i32_0 = arith.constant 0 : i32
    %c0_i32_1 = arith.constant 0 : i32
    %c0_i32_2 = arith.constant 0 : i32
    return %c0_i32, %c0_i32_0, %c0_i32_1 : i32, i32, i32
  }
  func.func @transform_2(%arg0: i32) -> (i32, i32) {
    %c0_i32 = arith.constant 0 : i32
    %c0_i32_0 = arith.constant 0 : i32
    %c0_i32_1 = arith.constant 0 : i32
    return %c0_i32, %c0_i32_0 : i32, i32
  }
  func.func @transform_3(%arg0: i32) -> (i32, i32) {
    %c0_i32 = arith.constant 0 : i32
    %c0_i32_0 = arith.constant 0 : i32
    %c0_i32_1 = arith.constant 0 : i32
    return %c0_i32, %c0_i32_0 : i32, i32
  }
  func.func @transform_4(%arg0: i32) -> (i32, i32) {
    %c0_i32 = arith.constant 0 : i32
    %c0_i32_0 = arith.constant 0 : i32
    %c0_i32_1 = arith.constant 0 : i32
    return %c0_i32, %c0_i32_0 : i32, i32
  }
  func.func @transform_5(%arg0: i32) -> (i32, i32) {
    %c0_i32 = arith.constant 0 : i32
    %c0_i32_0 = arith.constant 0 : i32
    %c0_i32_1 = arith.constant 0 : i32
    return %c0_i32, %c0_i32_0 : i32, i32
  }
  func.func @transform_6(%arg0: i32) -> (i32, i32) {
    %c0_i32 = arith.constant 0 : i32
    %c0_i32_0 = arith.constant 0 : i32
    %c0_i32_1 = arith.constant 0 : i32
    return %c0_i32, %c0_i32_0 : i32, i32
  }
  func.func @transform_7(%arg0: i32) -> i32 {
    %c0_i32 = arith.constant 0 : i32
    %c0_i32_0 = arith.constant 0 : i32
    return %c0_i32 : i32
  }
  func.func @transform_8(%arg0: i32) -> i32 {
    %c0_i32 = arith.constant 0 : i32
    %c0_i32_0 = arith.constant 0 : i32
    return %c0_i32 : i32
  }
  func.func @transform_9(%arg0: i32) -> (i32, i32, i32) {
    %c0_i32 = arith.constant 0 : i32
    %c0_i32_0 = arith.constant 0 : i32
    %c0_i32_1 = arith.constant 0 : i32
    return %arg0, %c0_i32, %c0_i32_0 : i32, i32, i32
  }
}

</mosaic_0001>

<llo_original>
// kernel: tpu_custom_call.1
$region0: #{tpu_custom_call.1}
  #allocation0 [shape = 'u32[]', space=smem, size = 0x4, offset = 0x4, fixed_abs, tag = 'smem constant byte address 0x4 - core index']
  #allocation1 [shape = 'u32[144,128]{1,0:T(1,128)}', space=vmem, size = 0x12000, scoped, tag = 'internal scratch']
  #allocation2 [shape = 'f32[1]{0:T(128)S(6)}', space=smem, size = 0x200, scoped, tag = 'scoped memory for tpu_custom_call.1']
  %s0 = inlined_call_operand.vmem [shape: f32[8,32,256], index: 0, kind: input, shape index: {}]
  %s1 = inlined_call_operand.vmem [shape: f32[4,256,64], index: 1, kind: input, shape index: {}]
  %s2 = inlined_call_operand.vmem [shape: f32[64,256], index: 2, kind: input, shape index: {}]
  %s3 = inlined_call_operand.vmem [shape: f32[32,2], index: 3, kind: input, shape index: {}]
  %s4 = inlined_call_operand.vmem [shape: f32[1,2], index: 4, kind: input, shape index: {}]
  %s5 = inlined_call_operand.vmem [shape: f32[2,32], index: 5, kind: input, shape index: {}]
  %s6 = inlined_call_operand.vmem [shape: f32[1,32], index: 6, kind: input, shape index: {}]
  %s7 = inlined_call_operand.vmem [shape: f32[2], index: 7, kind: input, shape index: {}]
  %s8 = inlined_call_operand.<no memory space> [shape: f32[1], index: 8, kind: input, shape index: {}]
  %s9 = inlined_call_operand.hbm [shape: f32[8,32,256], index: 9, kind: output, shape index: {}]
  %s10 = sld [smem:[#allocation0]]
  $region73: #{tpu_custom_call.1} parent=0
    _
  %s12 = ssub.s32 1, %s10
  %s13 = scalar_select 0, %s12, %s10
  %14 = sst [smem:[#allocation2]] %s8
  $region1: #{tpu_custom_call.1} parent=0
    #allocation3 [shape = 'u8[512]{0}', space=smem, size = 0x200, scoped, tag = 'input window, operand 7, single buffered']
    #allocation4 [shape = 's32[2]{0}', space=sflag, size = 0x8, scoped, tag = 'scoped memory for tpu_custom_call.1']
    #allocation5 [shape = 's32[2]{0}', space=sflag, size = 0x8, scoped, tag = 'scoped memory for tpu_custom_call.1']
    #allocation6 [shape = 'u8[262144]{0}', space=vmem, size = 0x40000, scoped, tag = 'output window, operand 0']
    %15 = vsyncpa [#allocation5], 0
    %16 = vsyncpa [#allocation4], 0
    %s17 = scalar_lea.sflag [#allocation4], 1
    %18 = vsyncpa %s17, 0
    loop: start=0, step=1, limit=4
    $region2: #{tpu_custom_call.1} parent=1 // loop_pre_header
      _
    $region3: #{tpu_custom_call.1} parent=1 // loop_header
      %s20 = sphi 0, %s24
      %p21 = scmp.ge.s32.totalorder %s20, 4
      %s30 = sphi 0, %s32
      %s33 = sphi 0, %s30
      %s34 = sphi 0, %s33
      %s50 = sphi 0, %s34
      %s54 = sphi 0, %s54
      %s56 = sphi 0, %s54
      %s57 = sphi 0, %s56
      %s71 = sphi 0, %s57
      %s75 = sphi 0, %s75
      %s77 = sphi 0, %s75
      %s78 = sphi 0, %s77
      %s92 = sphi 0, %s78
      %s96 = sphi 0, %s96
      %s98 = sphi 0, %s96
      %s99 = sphi 0, %s98
      %s113 = sphi 0, %s99
      %s117 = sphi 0, %s117
      %s119 = sphi 0, %s117
      %s120 = sphi 0, %s119
      %s134 = sphi 0, %s120
      %s138 = sphi 0, %s138
      %s140 = sphi 0, %s138
      %s141 = sphi 0, %s140
      %s155 = sphi 0, %s141
      %s159 = sphi 0, %s159
      %s161 = sphi 0, %s159
      %s162 = sphi 0, %s161
      %s176 = sphi 0, %s162
      %s180 = sphi 0, %s180
      %s182 = sphi 0, %s180
      %s183 = sphi 0, %s182
      %s197 = sphi 0, %s183
      %s201 = sphi 0, %s201
      %s203 = sphi 0, %s201
      %s204 = sphi 0, %s203
      %s218 = sphi 0, %s204
      %s224 = sphi 0, %s226
      %s227 = sphi 0, %s224
      %s228 = sphi 0, %s227
      %s244 = sphi 0, %s228
    $region4: #{tpu_custom_call.1} parent=1 // loop_header_branch
      %23 = sbr.rel (%p21) target = $region8
    $region5: #{tpu_custom_call.1} parent=1 // loop_body
      %s25 = ssub.s32 %s20, 1
      %s26 = ssub.s32 %s20, 2
      %s27 = sadd.s32 %s20, 1
      %s28 = ssub.s32 %s20, %s27
      %p29 = scmp.eq.s32.totalorder %s28, 0
      %s31 = sadd.s32 %s30, 1
      %s32 = scalar_select %p29, %s30, %s31
      %p35 = pneg %p29
      %p36 = scmp.eq.s32.totalorder %s20, 1
      %p37 = por %p35, %p36
      %p38 = scmp.ne.s32.totalorder %s30, %s33
      %p39 = scmp.eq.s32.totalorder %s20, 0
      %p40 = por %p38, %p39
      %p41 = scmp.ne.s32.totalorder %s30, %s33
      %p42 = scmp.eq.s32.totalorder %s25, 1
      %p43 = por %p41, %p42
      %p44 = scmp.ne.s32.totalorder %s33, %s34
      %p45 = scmp.eq.s32.totalorder %s25, 0
      %p46 = por %p44, %p45
      %p47 = scmp.ne.s32.totalorder %s33, %s34
      %p48 = scmp.eq.s32.totalorder %s26, 1
      %p49 = por %p47, %p48
      %p51 = scmp.ne.s32.totalorder %s34, %s50
      %p52 = scmp.eq.s32.totalorder %s26, 0
      %p53 = por %p51, %p52
      %s55 = sadd.s32 %s54, 1
      %p58 = scmp.eq.s32.totalorder %s20, 1
      %p59 = scmp.ne.s32.totalorder %s54, %s56
      %p60 = scmp.eq.s32.totalorder %s20, 0
      %p61 = por %p59, %p60
      %p62 = scmp.ne.s32.totalorder %s54, %s56
      %p63 = scmp.eq.s32.totalorder %s25, 1
      %p64 = por %p62, %p63
      %p65 = scmp.ne.s32.totalorder %s56, %s57
      %p66 = scmp.eq.s32.totalorder %s25, 0
      %p67 = por %p65, %p66
      %p68 = scmp.ne.s32.totalorder %s56, %s57
      %p69 = scmp.eq.s32.totalorder %s26, 1
      %p70 = por %p68, %p69
      %p72 = scmp.ne.s32.totalorder %s57, %s71
      %p73 = scmp.eq.s32.totalorder %s26, 0
      %p74 = por %p72, %p73
      %s76 = sadd.s32 %s75, 1
      %p79 = scmp.eq.s32.totalorder %s20, 1
      %p80 = scmp.ne.s32.totalorder %s75, %s77
      %p81 = scmp.eq.s32.totalorder %s20, 0
      %p82 = por %p80, %p81
      %p83 = scmp.ne.s32.totalorder %s75, %s77
      %p84 = scmp.eq.s32.totalorder %s25, 1
      %p85 = por %p83, %p84
      %p86 = scmp.ne.s32.totalorder %s77, %s78
      %p87 = scmp.eq.s32.totalorder %s25, 0
      %p88 = por %p86, %p87
      %p89 = scmp.ne.s32.totalorder %s77, %s78
      %p90 = scmp.eq.s32.totalorder %s26, 1
      %p91 = por %p89, %p90
      %p93 = scmp.ne.s32.totalorder %s78, %s92
      %p94 = scmp.eq.s32.totalorder %s26, 0
      %p95 = por %p93, %p94
      %s97 = sadd.s32 %s96, 1
      %p100 = scmp.eq.s32.totalorder %s20, 1
      %p101 = scmp.ne.s32.totalorder %s96, %s98
      %p102 = scmp.eq.s32.totalorder %s20, 0
      %p103 = por %p101, %p102
      %p104 = scmp.ne.s32.totalorder %s96, %s98
      %p105 = scmp.eq.s32.totalorder %s25, 1
      %p106 = por %p104, %p105
      %p107 = scmp.ne.s32.totalorder %s98, %s99
      %p108 = scmp.eq.s32.totalorder %s25, 0
      %p109 = por %p107, %p108
      %p110 = scmp.ne.s32.totalorder %s98, %s99
      %p111 = scmp.eq.s32.totalorder %s26, 1
      %p112 = por %p110, %p111
      %p114 = scmp.ne.s32.totalorder %s99, %s113
      %p115 = scmp.eq.s32.totalorder %s26, 0
      %p116 = por %p114, %p115
      %s118 = sadd.s32 %s117, 1
      %p121 = scmp.eq.s32.totalorder %s20, 1
      %p122 = scmp.ne.s32.totalorder %s117, %s119
      %p123 = scmp.eq.s32.totalorder %s20, 0
      %p124 = por %p122, %p123
      %p125 = scmp.ne.s32.totalorder %s117, %s119
      %p126 = scmp.eq.s32.totalorder %s25, 1
      %p127 = por %p125, %p126
      %p128 = scmp.ne.s32.totalorder %s119, %s120
      %p129 = scmp.eq.s32.totalorder %s25, 0
      %p130 = por %p128, %p129
      %p131 = scmp.ne.s32.totalorder %s119, %s120
      %p132 = scmp.eq.s32.totalorder %s26, 1
      %p133 = por %p131, %p132
      %p135 = scmp.ne.s32.totalorder %s120, %s134
      %p136 = scmp.eq.s32.totalorder %s26, 0
      %p137 = por %p135, %p136
      %s139 = sadd.s32 %s138, 1
      %p142 = scmp.eq.s32.totalorder %s20, 1
      %p143 = scmp.ne.s32.totalorder %s138, %s140
      %p144 = scmp.eq.s32.totalorder %s20, 0
      %p145 = por %p143, %p144
      %p146 = scmp.ne.s32.totalorder %s138, %s140
      %p147 = scmp.eq.s32.totalorder %s25, 1
      %p148 = por %p146, %p147
      %p149 = scmp.ne.s32.totalorder %s140, %s141
      %p150 = scmp.eq.s32.totalorder %s25, 0
      %p151 = por %p149, %p150
      %p152 = scmp.ne.s32.totalorder %s140, %s141
      %p153 = scmp.eq.s32.totalorder %s26, 1
      %p154 = por %p152, %p153
      %p156 = scmp.ne.s32.totalorder %s141, %s155
      %p157 = scmp.eq.s32.totalorder %s26, 0
      %p158 = por %p156, %p157
      %s160 = sadd.s32 %s159, 1
      %p163 = scmp.eq.s32.totalorder %s20, 1
      %p164 = scmp.ne.s32.totalorder %s159, %s161
      %p165 = scmp.eq.s32.totalorder %s20, 0
      %p166 = por %p164, %p165
      %p167 = scmp.ne.s32.totalorder %s159, %s161
      %p168 = scmp.eq.s32.totalorder %s25, 1
      %p169 = por %p167, %p168
      %p170 = scmp.ne.s32.totalorder %s161, %s162
      %p171 = scmp.eq.s32.totalorder %s25, 0
      %p172 = por %p170, %p171
      %p173 = scmp.ne.s32.totalorder %s161, %s162
      %p174 = scmp.eq.s32.totalorder %s26, 1
      %p175 = por %p173, %p174
      %p177 = scmp.ne.s32.totalorder %s162, %s176
      %p178 = scmp.eq.s32.totalorder %s26, 0
      %p179 = por %p177, %p178
      %s181 = sadd.s32 %s180, 1
      %p184 = scmp.eq.s32.totalorder %s20, 1
      %p185 = scmp.ne.s32.totalorder %s180, %s182
      %p186 = scmp.eq.s32.totalorder %s20, 0
      %p187 = por %p185, %p186
      %p188 = scmp.ne.s32.totalorder %s180, %s182
      %p189 = scmp.eq.s32.totalorder %s25, 1
      %p190 = por %p188, %p189
      %p191 = scmp.ne.s32.totalorder %s182, %s183
      %p192 = scmp.eq.s32.totalorder %s25, 0
      %p193 = por %p191, %p192
      %p194 = scmp.ne.s32.totalorder %s182, %s183
      %p195 = scmp.eq.s32.totalorder %s26, 1
      %p196 = por %p194, %p195
      %p198 = scmp.ne.s32.totalorder %s183, %s197
      %p199 = scmp.eq.s32.totalorder %s26, 0
      %p200 = por %p198, %p199
      %s202 = sadd.s32 %s201, 1
      %p205 = scmp.eq.s32.totalorder %s20, 1
      %p206 = scmp.ne.s32.totalorder %s201, %s203
      %p207 = scmp.eq.s32.totalorder %s20, 0
      %p208 = por %p206, %p207
      %p209 = scmp.ne.s32.totalorder %s201, %s203
      %p210 = scmp.eq.s32.totalorder %s25, 1
      %p211 = por %p209, %p210
      %p212 = scmp.ne.s32.totalorder %s203, %s204
      %p213 = scmp.eq.s32.totalorder %s25, 0
      %p214 = por %p212, %p213
      %p215 = scmp.ne.s32.totalorder %s203, %s204
      %p216 = scmp.eq.s32.totalorder %s26, 1
      %p217 = por %p215, %p216
      %p219 = scmp.ne.s32.totalorder %s204, %s218
      %p220 = scmp.eq.s32.totalorder %s26, 0
      %p221 = por %p219, %p220
      %s222 = ssub.s32 %s20, %s27
      %p223 = scmp.eq.s32.totalorder %s222, 0
      %s225 = sadd.s32 %s224, 1
      %s226 = scalar_select %p223, %s224, %s225
      %p229 = pneg %p223
      %p230 = scmp.eq.s32.totalorder %s20, 1
      %p231 = por %p229, %p230
      %p232 = scmp.ne.s32.totalorder %s224, %s227
      %p233 = scmp.eq.s32.totalorder %s20, 0
      %p234 = por %p232, %p233
      %p235 = scmp.ne.s32.totalorder %s224, %s227
      %p236 = scmp.eq.s32.totalorder %s25, 1
      %p237 = por %p235, %p236
      %p238 = scmp.ne.s32.totalorder %s227, %s228
      %p239 = scmp.eq.s32.totalorder %s25, 0
      %p240 = por %p238, %p239
      %p241 = scmp.ne.s32.totalorder %s227, %s228
      %p242 = scmp.eq.s32.totalorder %s26, 1
      %p243 = por %p241, %p242
      %p245 = scmp.ne.s32.totalorder %s228, %s244
      %p246 = scmp.eq.s32.totalorder %s26, 0
      %p247 = por %p245, %p246
      %p248 = scmp.le.s32.totalorder 1, %s20
      %p249 = scmp.lt.s32.totalorder %s20, 3
      %p250 = pnand %p248, %p249
      %p251 = pneg %p250
      // Predicated region
      $region9: #{tpu_custom_call.1} parent=5 // pred_check
        _
      $region10: #{tpu_custom_call.1} parent=5 // pred_check_branch
        %253 = sbr.rel (%p250) target = $region12
      $region11: #{tpu_custom_call.1} parent=5 // pred_region
        %s254 = ssub.s32 %s20, 1
        // Predicated region
        $region13: #{tpu_custom_call.1} parent=11 // pred_check
          %p255 = pneg %p67
        $region14: #{tpu_custom_call.1} parent=11 // pred_check_branch
          %257 = sbr.rel (%p255) target = $region16
        $region15: #{tpu_custom_call.1} parent=11 // pred_region
          _
        $region16: #{tpu_custom_call.1} parent=11 // pred_fallthru
          _
        // Predicated region
        $region17: #{tpu_custom_call.1} parent=11 // pred_check
          %p258 = pneg %p88
        $region18: #{tpu_custom_call.1} parent=11 // pred_check_branch
          %260 = sbr.rel (%p258) target = $region20
        $region19: #{tpu_custom_call.1} parent=11 // pred_region
          _
        $region20: #{tpu_custom_call.1} parent=11 // pred_fallthru
          _
        // Predicated region
        $region21: #{tpu_custom_call.1} parent=11 // pred_check
          %p261 = pneg %p109
        $region22: #{tpu_custom_call.1} parent=11 // pred_check_branch
          %263 = sbr.rel (%p261) target = $region24
        $region23: #{tpu_custom_call.1} parent=11 // pred_region
          _
        $region24: #{tpu_custom_call.1} parent=11 // pred_fallthru
          _
        // Predicated region
        $region25: #{tpu_custom_call.1} parent=11 // pred_check
          %p264 = pneg %p130
        $region26: #{tpu_custom_call.1} parent=11 // pred_check_branch
          %266 = sbr.rel (%p264) target = $region28
        $region27: #{tpu_custom_call.1} parent=11 // pred_region
          _
        $region28: #{tpu_custom_call.1} parent=11 // pred_fallthru
          _
        // Predicated region
        $region29: #{tpu_custom_call.1} parent=11 // pred_check
          %p267 = pneg %p151
        $region30: #{tpu_custom_call.1} parent=11 // pred_check_branch
          %269 = sbr.rel (%p267) target = $region32
        $region31: #{tpu_custom_call.1} parent=11 // pred_region
          _
        $region32: #{tpu_custom_call.1} parent=11 // pred_fallthru
          _
        // Predicated region
        $region33: #{tpu_custom_call.1} parent=11 // pred_check
          %p270 = pneg %p172
        $region34: #{tpu_custom_call.1} parent=11 // pred_check_branch
          %272 = sbr.rel (%p270) target = $region36
        $region35: #{tpu_custom_call.1} parent=11 // pred_region
          _
        $region36: #{tpu_custom_call.1} parent=11 // pred_fallthru
          _
        // Predicated region
        $region37: #{tpu_custom_call.1} parent=11 // pred_check
          %p273 = pneg %p193
        $region38: #{tpu_custom_call.1} parent=11 // pred_check_branch
          %275 = sbr.rel (%p273) target = $region40
        $region39: #{tpu_custom_call.1} parent=11 // pred_region
          %s277 = ssub.s32 16, 16
          %278 = vsyncadd [#allocation5], %s277
          %s280 = sshll.u32 %s7, 4
          %s281 = int_to_ptr.vmem [resolvable:$true] %s280
          %283 = dma.vmem_to_smem %s281, 16, [#allocation3], [#allocation5]
        $region40: #{tpu_custom_call.1} parent=11 // pred_fallthru
          _
        // Predicated region
        $region41: #{tpu_custom_call.1} parent=11 // pred_check
          %p284 = pneg %p214
        $region42: #{tpu_custom_call.1} parent=11 // pred_check_branch
          %286 = sbr.rel (%p284) target = $region44
        $region43: #{tpu_custom_call.1} parent=11 // pred_region
          _
        $region44: #{tpu_custom_call.1} parent=11 // pred_fallthru
          _
      $region12: #{tpu_custom_call.1} parent=5 // pred_fallthru
        _
      %p287 = scmp.lt.s32.totalorder %s20, 2
      // Predicated region
      $region45: #{tpu_custom_call.1} parent=5 // pred_check
        %p288 = pneg %p287
      $region46: #{tpu_custom_call.1} parent=5 // pred_check_branch
        %290 = sbr.rel (%p288) target = $region48
      $region47: #{tpu_custom_call.1} parent=5 // pred_region
        // Predicated region
        $region49: #{tpu_custom_call.1} parent=47 // pred_check
          %p291 = pneg %p40
        $region50: #{tpu_custom_call.1} parent=47 // pred_check_branch
          %293 = sbr.rel (%p291) target = $region52
        $region51: #{tpu_custom_call.1} parent=47 // pred_region
          %s294 = smul.u32 4, %s20
          %p295 = scmp.lt.s32.totalorder %s294, 7
          %s296 = scalar_select %p295, %s294, 7
          %s297 = smul.addr %s296, 8
          %s298 = smul.addr %s297, 8
          %s299 = scalar_lea.vmem %s0, %s298
          %s300 = smul.u32 4, %s20
        $region52: #{tpu_custom_call.1} parent=47 // pred_fallthru
          _
      $region48: #{tpu_custom_call.1} parent=5 // pred_fallthru
        _
      %p301 = scmp.le.s32.totalorder 1, %s20
      %p302 = scmp.lt.s32.totalorder %s20, 3
      %p303 = pnand %p301, %p302
      %p304 = pneg %p303
      // Predicated region
      $region53: #{tpu_custom_call.1} parent=5 // pred_check
        _
      $region54: #{tpu_custom_call.1} parent=5 // pred_check_branch
        %306 = sbr.rel (%p303) target = $region56
      $region55: #{tpu_custom_call.1} parent=5 // pred_region
        %s307 = ssub.s32 %s20, 1
        // Predicated region
        $region57: #{tpu_custom_call.1} parent=55 // pred_check
          %p308 = pneg %p193
        $region58: #{tpu_custom_call.1} parent=55 // pred_check_branch
          %310 = sbr.rel (%p308) target = $region60
        $region59: #{tpu_custom_call.1} parent=55 // pred_region
          %311 = dma.done [#allocation5], 16
        $region60: #{tpu_custom_call.1} parent=55 // pred_fallthru
          _
        %312 = sfence
        %s313 = smul.u32 4, %s25
        %p314 = scmp.lt.s32.totalorder %s313, 7
        %s315 = scalar_select %p314, %s313, 7
        %s316 = smul.addr %s315, 8
        %s317 = smul.addr %s316, 8
        %s318 = scalar_lea.vmem %s0, %s317
        %p319 = pneg %p46
        %p320 = pneg %p43
        %p321 = pneg %p67
        %p322 = pneg %p64
        %p323 = pneg %p88
        %p324 = pneg %p85
        %p325 = pneg %p109
        %p326 = pneg %p106
        %p327 = pneg %p130
        %p328 = pneg %p127
        %p329 = pneg %p151
        %p330 = pneg %p148
        %p331 = pneg %p172
        %p332 = pneg %p169
        %p333 = pneg %p193
        %p334 = pneg %p190
        %p335 = pneg %p214
        %p336 = pneg %p211
        %p337 = pneg %p240
        %p338 = pneg %p237
        %s339 = sand.u32 %s227, 1
        %s340 = scalar_lea.sflag [#allocation4], %s339
        %s341 = sand.u32 %s227, 1
        %s342 = smul.addr %s341, 256
        %s343 = scalar_lea.vmem [#allocation6], %s342
        %s344 = smul.u32 4, %s25
        %p345 = scmp.lt.s32.totalorder %s344, 7
        %s346 = scalar_select %p345, %s344, 7
        %s347 = smul.addr %s346, 8
        %s348 = smul.addr %s347, 8
        %s349 = scalar_lea.vmem %s0, %s348
        %s350 = smul.u32 4, %s25
        %s351 = smul.u32 4, %s25
        %v352 = vld [vmem:[%s349] sm:$0xff]
        %v353 = vld [vmem:[%s349 + $0x8] sm:$0xff]
        %v354 = vld [vmem:[%s349 + $0x10] sm:$0xff]
        %v355 = vld [vmem:[%s349 + $0x18] sm:$0xff]
        %v356 = vld [vmem:[%s349 + $0x20] sm:$0xff]
        %v357 = vld [vmem:[%s349 + $0x28] sm:$0xff]
        %v358 = vld [vmem:[%s349 + $0x30] sm:$0xff]
        %v359 = vld [vmem:[%s349 + $0x38] sm:$0xff]
        %v360 = vld [vmem:[%s349 + $0x40] sm:$0xff]
        %v361 = vld [vmem:[%s349 + $0x48] sm:$0xff]
        %v362 = vld [vmem:[%s349 + $0x50] sm:$0xff]
        %v363 = vld [vmem:[%s349 + $0x58] sm:$0xff]
        %v364 = vld [vmem:[%s349 + $0x60] sm:$0xff]
        %v365 = vld [vmem:[%s349 + $0x68] sm:$0xff]
        %v366 = vld [vmem:[%s349 + $0x70] sm:$0xff]
        %v367 = vld [vmem:[%s349 + $0x78] sm:$0xff]
        %v368 = vld [vmem:[%s349 + $0x80] sm:$0xff]
        %v369 = vld [vmem:[%s349 + $0x88] sm:$0xff]
        %v370 = vld [vmem:[%s349 + $0x90] sm:$0xff]
        %v371 = vld [vmem:[%s349 + $0x98] sm:$0xff]
        %v372 = vld [vmem:[%s349 + $0xa0] sm:$0xff]
        %v373 = vld [vmem:[%s349 + $0xa8] sm:$0xff]
        %v374 = vld [vmem:[%s349 + $0xb0] sm:$0xff]
        %v375 = vld [vmem:[%s349 + $0xb8] sm:$0xff]
        %v376 = vld [vmem:[%s349 + $0xc0] sm:$0xff]
        %v377 = vld [vmem:[%s349 + $0xc8] sm:$0xff]
        %v378 = vld [vmem:[%s349 + $0xd0] sm:$0xff]
        %v379 = vld [vmem:[%s349 + $0xd8] sm:$0xff]
        %v380 = vld [vmem:[%s349 + $0xe0] sm:$0xff]
        %v381 = vld [vmem:[%s349 + $0xe8] sm:$0xff]
        %v382 = vld [vmem:[%s349 + $0xf0] sm:$0xff]
        %v383 = vld [vmem:[%s349 + $0xf8] sm:$0xff]
        %v384 = vld [vmem:[%s1] sm:$0xff]
        %v385 = vld [vmem:[%s1 + $0x8] sm:$0xff]
        %v386 = vld [vmem:[%s1 + $0x10] sm:$0xff]
        %v387 = vld [vmem:[%s1 + $0x18] sm:$0xff]
        %v388 = vld [vmem:[%s1 + $0x20] sm:$0xff]
        %v389 = vld [vmem:[%s1 + $0x28] sm:$0xff]
        %v390 = vld [vmem:[%s1 + $0x30] sm:$0xff]
        %v391 = vld [vmem:[%s1 + $0x38] sm:$0xff]
        %v392 = vld [vmem:[%s1 + $0x40] sm:$0xff]
        %v393 = vld [vmem:[%s1 + $0x48] sm:$0xff]
        %v394 = vld [vmem:[%s1 + $0x50] sm:$0xff]
        %v395 = vld [vmem:[%s1 + $0x58] sm:$0xff]
        %v396 = vld [vmem:[%s1 + $0x60] sm:$0xff]
        %v397 = vld [vmem:[%s1 + $0x68] sm:$0xff]
        %v398 = vld [vmem:[%s1 + $0x70] sm:$0xff]
        %v399 = vld [vmem:[%s1 + $0x78] sm:$0xff]
        %v400 = vld [vmem:[%s1 + $0x80] sm:$0xff]
        %v401 = vld [vmem:[%s1 + $0x88] sm:$0xff]
        %v402 = vld [vmem:[%s1 + $0x90] sm:$0xff]
        %v403 = vld [vmem:[%s1 + $0x98] sm:$0xff]
        %v404 = vld [vmem:[%s1 + $0xa0] sm:$0xff]
        %v405 = vld [vmem:[%s1 + $0xa8] sm:$0xff]
        %v406 = vld [vmem:[%s1 + $0xb0] sm:$0xff]
        %v407 = vld [vmem:[%s1 + $0xb8] sm:$0xff]
        %v408 = vld [vmem:[%s1 + $0xc0] sm:$0xff]
        %v409 = vld [vmem:[%s1 + $0xc8] sm:$0xff]
        %v410 = vld [vmem:[%s1 + $0xd0] sm:$0xff]
        %v411 = vld [vmem:[%s1 + $0xd8] sm:$0xff]
        %v412 = vld [vmem:[%s1 + $0xe0] sm:$0xff]
        %v413 = vld [vmem:[%s1 + $0xe8] sm:$0xff]
        %v414 = vld [vmem:[%s1 + $0xf0] sm:$0xff]
        %v415 = vld [vmem:[%s1 + $0xf8] sm:$0xff]
        %416 = vmatprep.subr.mxu0 0.0
        %417 = vmatpush1.msra.mxu0 %v384
        %418 = vmatprep.subr.mxu0 0.0
        %419 = vmatpush1.msra.mxu0 %v385
        %420 = vmatprep.subr.mxu0 0.0
        %421 = vmatpush1.msra.mxu0 %v386
        %422 = vmatprep.subr.mxu0 0.0
        %423 = vmatpush1.msra.mxu0 %v387
        %424 = vmatprep.subr.mxu0 0.0
        %425 = vmatpush1.msra.mxu0 %v388
        %426 = vmatprep.subr.mxu0 0.0
        %427 = vmatpush1.msra.mxu0 %v389
        %428 = vmatprep.subr.mxu0 0.0
        %429 = vmatpush1.msra.mxu0 %v390
        %430 = vmatprep.subr.mxu0 0.0
        %431 = vmatpush1.msra.mxu0 %v391
        %432 = vmatprep.subr.mxu0 0.0
        %433 = vmatpush1.msra.mxu0 %v392
        %434 = vmatprep.subr.mxu0 0.0
        %435 = vmatpush1.msra.mxu0 %v393
        %436 = vmatprep.subr.mxu0 0.0
        %437 = vmatpush1.msra.mxu0 %v394
        %438 = vmatprep.subr.mxu0 0.0
        %439 = vmatpush1.msra.mxu0 %v395
        %440 = vmatprep.subr.mxu0 0.0
        %441 = vmatpush1.msra.mxu0 %v396
        %442 = vmatprep.subr.mxu0 0.0
        %443 = vmatpush1.msra.mxu0 %v397
        %444 = vmatprep.subr.mxu0 0.0
        %445 = vmatpush1.msra.mxu0 %v398
        %446 = vmatprep.subr.mxu0 0.0
        %447 = vmatpush1.msra.mxu0 %v399
        %448 = vmatprep.subr.mxu0 0.0
        %449 = vmatpush1.msra.mxu0 %v400
        %450 = vmatprep.subr.mxu0 0.0
        %451 = vmatpush1.msra.mxu0 %v401
        %452 = vmatprep.subr.mxu0 0.0
        %453 = vmatpush1.msra.mxu0 %v402
        %454 = vmatprep.subr.mxu0 0.0
        %455 = vmatpush1.msra.mxu0 %v403
        %456 = vmatprep.subr.mxu0 0.0
        %457 = vmatpush1.msra.mxu0 %v404
        %458 = vmatprep.subr.mxu0 0.0
        %459 = vmatpush1.msra.mxu0 %v405
        %460 = vmatprep.subr.mxu0 0.0
        %461 = vmatpush1.msra.mxu0 %v406
        %462 = vmatprep.subr.mxu0 0.0
        %463 = vmatpush1.msra.mxu0 %v407
        %464 = vmatprep.subr.mxu0 0.0
        %465 = vmatpush1.msra.mxu0 %v408
        %466 = vmatprep.subr.mxu0 0.0
        %467 = vmatpush1.msra.mxu0 %v409
        %468 = vmatprep.subr.mxu0 0.0
        %469 = vmatpush1.msra.mxu0 %v410
        %470 = vmatprep.subr.mxu0 0.0
        %471 = vmatpush1.msra.mxu0 %v411
        %472 = vmatprep.subr.mxu0 0.0
        %473 = vmatpush1.msra.mxu0 %v412
        %474 = vmatprep.subr.mxu0 0.0
        %475 = vmatpush1.msra.mxu0 %v413
        %476 = vmatprep.subr.mxu0 0.0
        %477 = vmatpush1.msra.mxu0 %v414
        %478 = vmatprep.subr.mxu0 0.0
        %479 = vmatpush1.msra.mxu0 %v415
        %480 = vmatprep.mubr.f32.mxu0 %v353
        %481 = vmatmul.mubr.f32.gmra.mrb[0].mxu0 %v352
        %v482 = vpop.f32.mrb[0].mxu0
        %v483 = vadd.f32 0.0, %v482
        %v484 = vpop.f32.mrb[0].mxu0
        %485 = vmatprep.mubr.f32.mxu0 %v355
        %486 = vmatmul.mubr.f32.gmra.mrb[0].mxu0 %v354
        %v487 = vpop.f32.mrb[0].mxu0
        %v488 = vadd.f32 0.0, %v487
        %v489 = vpop.f32.mrb[0].mxu0
        %490 = vmatprep.mubr.f32.mxu0 %v357
        %491 = vmatmul.mubr.f32.gmra.mrb[0].mxu0 %v356
        %v492 = vpop.f32.mrb[0].mxu0
        %v493 = vadd.f32 0.0, %v492
        %v494 = vpop.f32.mrb[0].mxu0
        %495 = vmatprep.mubr.f32.mxu0 %v359
        %496 = vmatmul.mubr.f32.gmra.mrb[0].mxu0 %v358
        %v497 = vpop.f32.mrb[0].mxu0
        %v498 = vadd.f32 0.0, %v497
        %v499 = vpop.f32.mrb[0].mxu0
        %500 = vmatprep.mubr.f32.mxu0 %v361
        %501 = vmatmul.mubr.f32.gmra.mrb[0].mxu0 %v360
        %v502 = vpop.f32.mrb[0].mxu0
        %v503 = vadd.f32 0.0, %v502
        %v504 = vpop.f32.mrb[0].mxu0
        %505 = vmatprep.mubr.f32.mxu0 %v363
        %506 = vmatmul.mubr.f32.gmra.mrb[0].mxu0 %v362
        %v507 = vpop.f32.mrb[0].mxu0
        %v508 = vadd.f32 0.0, %v507
        %v509 = vpop.f32.mrb[0].mxu0
        %510 = vmatprep.mubr.f32.mxu0 %v365
        %511 = vmatmul.mubr.f32.gmra.mrb[0].mxu0 %v364
        %v512 = vpop.f32.mrb[0].mxu0
        %v513 = vadd.f32 0.0, %v512
        %v514 = vpop.f32.mrb[0].mxu0
        %515 = vmatprep.mubr.f32.mxu0 %v367
        %516 = vmatmul.mubr.f32.gmra.mrb[0].mxu0 %v366
        %v517 = vpop.f32.mrb[0].mxu0
        %v518 = vadd.f32 0.0, %v517
        %v519 = vpop.f32.mrb[0].mxu0
        %520 = vmatprep.mubr.f32.mxu0 %v369
        %521 = vmatmul.mubr.f32.gmra.mrb[0].mxu0 %v368
        %v522 = vpop.f32.mrb[0].mxu0
        %v523 = vadd.f32 0.0, %v522
        %v524 = vpop.f32.mrb[0].mxu0
        %525 = vmatprep.mubr.f32.mxu0 %v371
        %526 = vmatmul.mubr.f32.gmra.mrb[0].mxu0 %v370
        %v527 = vpop.f32.mrb[0].mxu0
        %v528 = vadd.f32 0.0, %v527
        %v529 = vpop.f32.mrb[0].mxu0
        %530 = vmatprep.mubr.f32.mxu0 %v373
        %531 = vmatmul.mubr.f32.gmra.mrb[0].mxu0 %v372
        %v532 = vpop.f32.mrb[0].mxu0
        %v533 = vadd.f32 0.0, %v532
        %v534 = vpop.f32.mrb[0].mxu0
        %535 = vmatprep.mubr.f32.mxu0 %v375
        %536 = vmatmul.mubr.f32.gmra.mrb[0].mxu0 %v374
        %v537 = vpop.f32.mrb[0].mxu0
        %v538 = vadd.f32 0.0, %v537
        %v539 = vpop.f32.mrb[0].mxu0
        %540 = vmatprep.mubr.f32.mxu0 %v377
        %541 = vmatmul.mubr.f32.gmra.mrb[0].mxu0 %v376
        %v542 = vpop.f32.mrb[0].mxu0
        %v543 = vadd.f32 0.0, %v542
        %v544 = vpop.f32.mrb[0].mxu0
        %545 = vmatprep.mubr.f32.mxu0 %v379
        %546 = vmatmul.mubr.f32.gmra.mrb[0].mxu0 %v378
        %v547 = vpop.f32.mrb[0].mxu0
        %v548 = vadd.f32 0.0, %v547
        %v549 = vpop.f32.mrb[0].mxu0
        %550 = vmatprep.mubr.f32.mxu0 %v381
        %551 = vmatmul.mubr.f32.gmra.mrb[0].mxu0 %v380
        %v552 = vpop.f32.mrb[0].mxu0
        %v553 = vadd.f32 0.0, %v552
        %v554 = vpop.f32.mrb[0].mxu0
        %555 = vmatprep.mubr.f32.mxu0 %v383
        %556 = vmatmul.mubr.f32.gmra.mrb[0].mxu0 %v382
        %v557 = vpop.f32.mrb[0].mxu0
        %v558 = vadd.f32 0.0, %v557
        %v559 = vpop.f32.mrb[0].mxu0
        %560 = vdwg.mxu0
        %s561 = scalar_lea.vmem %s1, 256
        %v562 = vld [vmem:[%s561] sm:$0xff]
        %v563 = vld [vmem:[%s561 + $0x8] sm:$0xff]
        %v564 = vld [vmem:[%s561 + $0x10] sm:$0xff]
        %v565 = vld [vmem:[%s561 + $0x18] sm:$0xff]
        %v566 = vld [vmem:[%s561 + $0x20] sm:$0xff]
        %v567 = vld [vmem:[%s561 + $0x28] sm:$0xff]
        %v568 = vld [vmem:[%s561 + $0x30] sm:$0xff]
        %v569 = vld [vmem:[%s561 + $0x38] sm:$0xff]
        %v570 = vld [vmem:[%s561 + $0x40] sm:$0xff]
        %v571 = vld [vmem:[%s561 + $0x48] sm:$0xff]
        %v572 = vld [vmem:[%s561 + $0x50] sm:$0xff]
        %v573 = vld [vmem:[%s561 + $0x58] sm:$0xff]
        %v574 = vld [vmem:[%s561 + $0x60] sm:$0xff]
        %v575 = vld [vmem:[%s561 + $0x68] sm:$0xff]
        %v576 = vld [vmem:[%s561 + $0x70] sm:$0xff]
        %v577 = vld [vmem:[%s561 + $0x78] sm:$0xff]
        %v578 = vld [vmem:[%s561 + $0x80] sm:$0xff]
        %v579 = vld [vmem:[%s561 + $0x88] sm:$0xff]
        %v580 = vld [vmem:[%s561 + $0x90] sm:$0xff]
        %v581 = vld [vmem:[%s561 + $0x98] sm:$0xff]
        %v582 = vld [vmem:[%s561 + $0xa0] sm:$0xff]
        %v583 = vld [vmem:[%s561 + $0xa8] sm:$0xff]
        %v584 = vld [vmem:[%s561 + $0xb0] sm:$0xff]
        %v585 = vld [vmem:[%s561 + $0xb8] sm:$0xff]
        %v586 = vld [vmem:[%s561 + $0xc0] sm:$0xff]
        %v587 = vld [vmem:[%s561 + $0xc8] sm:$0xff]
        %v588 = vld [vmem:[%s561 + $0xd0] sm:$0xff]
        %v589 = vld [vmem:[%s561 + $0xd8] sm:$0xff]
        %v590 = vld [vmem:[%s561 + $0xe0] sm:$0xff]
        %v591 = vld [vmem:[%s561 + $0xe8] sm:$0xff]
        %v592 = vld [vmem:[%s561 + $0xf0] sm:$0xff]
        %v593 = vld [vmem:[%s561 + $0xf8] sm:$0xff]
        %594 = vmatprep.subr.mxu0 0.0
        %595 = vmatpush1.msra.mxu0 %v562
        %596 = vmatprep.subr.mxu0 0.0
        %597 = vmatpush1.msra.mxu0 %v563
        %598 = vmatprep.subr.mxu0 0.0
        %599 = vmatpush1.msra.mxu0 %v564
        %600 = vmatprep.subr.mxu0 0.0
        %601 = vmatpush1.msra.mxu0 %v565
        %602 = vmatprep.subr.mxu0 0.0
        %603 = vmatpush1.msra.mxu0 %v566
        %604 = vmatprep.subr.mxu0 0.0
        %605 = vmatpush1.msra.mxu0 %v567
        %606 = vmatprep.subr.mxu0 0.0
        %607 = vmatpush1.msra.mxu0 %v568
        %608 = vmatprep.subr.mxu0 0.0
        %609 = vmatpush1.msra.mxu0 %v569
        %610 = vmatprep.subr.mxu0 0.0
        %611 = vmatpush1.msra.mxu0 %v570
        %612 = vmatprep.subr.mxu0 0.0
        %613 = vmatpush1.msra.mxu0 %v571
        %614 = vmatprep.subr.mxu0 0.0
        %615 = vmatpush1.msra.mxu0 %v572
        %616 = vmatprep.subr.mxu0 0.0
        %617 = vmatpush1.msra.mxu0 %v573
        %618 = vmatprep.subr.mxu0 0.0
        %619 = vmatpush1.msra.mxu0 %v574
        %620 = vmatprep.subr.mxu0 0.0
        %621 = vmatpush1.msra.mxu0 %v575
        %622 = vmatprep.subr.mxu0 0.0
        %623 = vmatpush1.msra.mxu0 %v576
        %624 = vmatprep.subr.mxu0 0.0
        %625 = vmatpush1.msra.mxu0 %v577
        %626 = vmatprep.subr.mxu0 0.0
        %627 = vmatpush1.msra.mxu0 %v578
        %628 = vmatprep.subr.mxu0 0.0
        %629 = vmatpush1.msra.mxu0 %v579
        %630 = vmatprep.subr.mxu0 0.0
        %631 = vmatpush1.msra.mxu0 %v580
        %632 = vmatprep.subr.mxu0 0.0
        %633 = vmatpush1.msra.mxu0 %v581
        %634 = vmatprep.subr.mxu0 0.0
        %635 = vmatpush1.msra.mxu0 %v582
        %636 = vmatprep.subr.mxu0 0.0
        %637 = vmatpush1.msra.mxu0 %v583
        %638 = vmatprep.subr.mxu0 0.0
        %639 = vmatpush1.msra.mxu0 %v584
        %640 = vmatprep.subr.mxu0 0.0
        %641 = vmatpush1.msra.mxu0 %v585
        %642 = vmatprep.subr.mxu0 0.0
        %643 = vmatpush1.msra.mxu0 %v586
        %644 = vmatprep.subr.mxu0 0.0
        %645 = vmatpush1.msra.mxu0 %v587
        %646 = vmatprep.subr.mxu0 0.0
        %647 = vmatpush1.msra.mxu0 %v588
        %648 = vmatprep.subr.mxu0 0.0
        %649 = vmatpush1.msra.mxu0 %v589
        %650 = vmatprep.subr.mxu0 0.0
        %651 = vmatpush1.msra.mxu0 %v590
        %652 = vmatprep.subr.mxu0 0.0
        %653 = vmatpush1.msra.mxu0 %v591
        %654 = vmatprep.subr.mxu0 0.0
        %655 = vmatpush1.msra.mxu0 %v592
        %656 = vmatprep.subr.mxu0 0.0
        %657 = vmatpush1.msra.mxu0 %v593
        %658 = vmatprep.mubr.f32.mxu0 %v353
        %659 = vmatmul.mubr.f32.gmra.mrb[0].mxu0 %v352
        %v660 = vpop.f32.mrb[0].mxu0
        %v661 = vadd.f32 0.0, %v660
        %v662 = vpop.f32.mrb[0].mxu0
        %663 = vmatprep.mubr.f32.mxu0 %v355
        %664 = vmatmul.mubr.f32.gmra.mrb[0].mxu0 %v354
        %v665 = vpop.f32.mrb[0].mxu0
        %v666 = vadd.f32 0.0, %v665
        %v667 = vpop.f32.mrb[0].mxu0
        %668 = vmatprep.mubr.f32.mxu0 %v357
        %669 = vmatmul.mubr.f32.gmra.mrb[0].mxu0 %v356
        %v670 = vpop.f32.mrb[0].mxu0
        %v671 = vadd.f32 0.0, %v670
        %v672 = vpop.f32.mrb[0].mxu0
        %673 = vmatprep.mubr.f32.mxu0 %v359
        %674 = vmatmul.mubr.f32.gmra.mrb[0].mxu0 %v358
        %v675 = vpop.f32.mrb[0].mxu0
        %v676 = vadd.f32 0.0, %v675
        %v677 = vpop.f32.mrb[0].mxu0
        %678 = vmatprep.mubr.f32.mxu0 %v361
        %679 = vmatmul.mubr.f32.gmra.mrb[0].mxu0 %v360
        %v680 = vpop.f32.mrb[0].mxu0
        %v681 = vadd.f32 0.0, %v680
        %v682 = vpop.f32.mrb[0].mxu0
        %683 = vmatprep.mubr.f32.mxu0 %v363
        %684 = vmatmul.mubr.f32.gmra.mrb[0].mxu0 %v362
        %v685 = vpop.f32.mrb[0].mxu0
        %v686 = vadd.f32 0.0, %v685
        %v687 = vpop.f32.mrb[0].mxu0
        %688 = vmatprep.mubr.f32.mxu0 %v365
        %689 = vmatmul.mubr.f32.gmra.mrb[0].mxu0 %v364
        %v690 = vpop.f32.mrb[0].mxu0
        %v691 = vadd.f32 0.0, %v690
        %v692 = vpop.f32.mrb[0].mxu0
        %693 = vmatprep.mubr.f32.mxu0 %v367
        %694 = vmatmul.mubr.f32.gmra.mrb[0].mxu0 %v366
        %v695 = vpop.f32.mrb[0].mxu0
        %v696 = vadd.f32 0.0, %v695
        %v697 = vpop.f32.mrb[0].mxu0
        %698 = vmatprep.mubr.f32.mxu0 %v369
        %699 = vmatmul.mubr.f32.gmra.mrb[0].mxu0 %v368
        %v700 = vpop.f32.mrb[0].mxu0
        %v701 = vadd.f32 0.0, %v700
        %v702 = vpop.f32.mrb[0].mxu0
        %703 = vmatprep.mubr.f32.mxu0 %v371
        %704 = vmatmul.mubr.f32.gmra.mrb[0].mxu0 %v370
        %v705 = vpop.f32.mrb[0].mxu0
        %v706 = vadd.f32 0.0, %v705
        %v707 = vpop.f32.mrb[0].mxu0
        %708 = vmatprep.mubr.f32.mxu0 %v373
        %709 = vmatmul.mubr.f32.gmra.mrb[0].mxu0 %v372
        %v710 = vpop.f32.mrb[0].mxu0
        %v711 = vadd.f32 0.0, %v710
        %v712 = vpop.f32.mrb[0].mxu0
        %713 = vmatprep.mubr.f32.mxu0 %v375
        %714 = vmatmul.mubr.f32.gmra.mrb[0].mxu0 %v374
        %v715 = vpop.f32.mrb[0].mxu0
        %v716 = vadd.f32 0.0, %v715
        %v717 = vpop.f32.mrb[0].mxu0
        %718 = vmatprep.mubr.f32.mxu0 %v377
        %719 = vmatmul.mubr.f32.gmra.mrb[0].mxu0 %v376
        %v720 = vpop.f32.mrb[0].mxu0
        %v721 = vadd.f32 0.0, %v720
        %v722 = vpop.f32.mrb[0].mxu0
        %723 = vmatprep.mubr.f32.mxu0 %v379
        %724 = vmatmul.mubr.f32.gmra.mrb[0].mxu0 %v378
        %v725 = vpop.f32.mrb[0].mxu0
        %v726 = vadd.f32 0.0, %v725
        %v727 = vpop.f32.mrb[0].mxu0
        %728 = vmatprep.mubr.f32.mxu0 %v381
        %729 = vmatmul.mubr.f32.gmra.mrb[0].mxu0 %v380
        %v730 = vpop.f32.mrb[0].mxu0
        %v731 = vadd.f32 0.0, %v730
        %v732 = vpop.f32.mrb[0].mxu0
        %733 = vmatprep.mubr.f32.mxu0 %v383
        %734 = vmatmul.mubr.f32.gmra.mrb[0].mxu0 %v382
        %v735 = vpop.f32.mrb[0].mxu0
        %v736 = vadd.f32 0.0, %v735
        %v737 = vpop.f32.mrb[0].mxu0
        %738 = vdwg.mxu0
        %s739 = scalar_lea.vmem %s1, 512
        %v740 = vld [vmem:[%s739] sm:$0xff]
        %v741 = vld [vmem:[%s739 + $0x8] sm:$0xff]
        %v742 = vld [vmem:[%s739 + $0x10] sm:$0xff]
        %v743 = vld [vmem:[%s739 + $0x18] sm:$0xff]
        %v744 = vld [vmem:[%s739 + $0x20] sm:$0xff]
        %v745 = vld [vmem:[%s739 + $0x28] sm:$0xff]
        %v746 = vld [vmem:[%s739 + $0x30] sm:$0xff]
        %v747 = vld [vmem:[%s739 + $0x38] sm:$0xff]
        %v748 = vld [vmem:[%s739 + $0x40] sm:$0xff]
        %v749 = vld [vmem:[%s739 + $0x48] sm:$0xff]
        %v750 = vld [vmem:[%s739 + $0x50] sm:$0xff]
        %v751 = vld [vmem:[%s739 + $0x58] sm:$0xff]
        %v752 = vld [vmem:[%s739 + $0x60] sm:$0xff]
        %v753 = vld [vmem:[%s739 + $0x68] sm:$0xff]
        %v754 = vld [vmem:[%s739 + $0x70] sm:$0xff]
        %v755 = vld [vmem:[%s739 + $0x78] sm:$0xff]
        %v756 = vld [vmem:[%s739 + $0x80] sm:$0xff]
        %v757 = vld [vmem:[%s739 + $0x88] sm:$0xff]
        %v758 = vld [vmem:[%s739 + $0x90] sm:$0xff]
        %v759 = vld [vmem:[%s739 + $0x98] sm:$0xff]
        %v760 = vld [vmem:[%s739 + $0xa0] sm:$0xff]
        %v761 = vld [vmem:[%s739 + $0xa8] sm:$0xff]
        %v762 = vld [vmem:[%s739 + $0xb0] sm:$0xff]
        %v763 = vld [vmem:[%s739 + $0xb8] sm:$0xff]
        %v764 = vld [vmem:[%s739 + $0xc0] sm:$0xff]
        %v765 = vld [vmem:[%s739 + $0xc8] sm:$0xff]
        %v766 = vld [vmem:[%s739 + $0xd0] sm:$0xff]
        %v767 = vld [vmem:[%s739 + $0xd8] sm:$0xff]
        %v768 = vld [vmem:[%s739 + $0xe0] sm:$0xff]
        %v769 = vld [vmem:[%s739 + $0xe8] sm:$0xff]
        %v770 = vld [vmem:[%s739 + $0xf0] sm:$0xff]
        %v771 = vld [vmem:[%s739 + $0xf8] sm:$0xff]
        %772 = vmatprep.subr.mxu0 0.0
        %773 = vmatpush1.msra.mxu0 %v740
        %774 = vmatprep.subr.mxu0 0.0
        %775 = vmatpush1.msra.mxu0 %v741
        %776 = vmatprep.subr.mxu0 0.0
        %777 = vmatpush1.msra.mxu0 %v742
        %778 = vmatprep.subr.mxu0 0.0
        %779 = vmatpush1.msra.mxu0 %v743
        %780 = vmatprep.subr.mxu0 0.0
        %781 = vmatpush1.msra.mxu0 %v744
        %782 = vmatprep.subr.mxu0 0.0
        %783 = vmatpush1.msra.mxu0 %v745
        %784 = vmatprep.subr.mxu0 0.0
        %785 = vmatpush1.msra.mxu0 %v746
        %786 = vmatprep.subr.mxu0 0.0
        %787 = vmatpush1.msra.mxu0 %v747
        %788 = vmatprep.subr.mxu0 0.0
        %789 = vmatpush1.msra.mxu0 %v748
        %790 = vmatprep.subr.mxu0 0.0
        %791 = vmatpush1.msra.mxu0 %v749
        %792 = vmatprep.subr.mxu0 0.0
        %793 = vmatpush1.msra.mxu0 %v750
        %794 = vmatprep.subr.mxu0 0.0
        %795 = vmatpush1.msra.mxu0 %v751
        %796 = vmatprep.subr.mxu0 0.0
        %797 = vmatpush1.msra.mxu0 %v752
        %798 = vmatprep.subr.mxu0 0.0
        %799 = vmatpush1.msra.mxu0 %v753
        %800 = vmatprep.subr.mxu0 0.0
        %801 = vmatpush1.msra.mxu0 %v754
        %802 = vmatprep.subr.mxu0 0.0
        %803 = vmatpush1.msra.mxu0 %v755
        %804 = vmatprep.subr.mxu0 0.0
        %805 = vmatpush1.msra.mxu0 %v756
        %806 = vmatprep.subr.mxu0 0.0
        %807 = vmatpush1.msra.mxu0 %v757
        %808 = vmatprep.subr.mxu0 0.0
        %809 = vmatpush1.msra.mxu0 %v758
        %810 = vmatprep.subr.mxu0 0.0
        %811 = vmatpush1.msra.mxu0 %v759
        %812 = vmatprep.subr.mxu0 0.0
        %813 = vmatpush1.msra.mxu0 %v760
        %814 = vmatprep.subr.mxu0 0.0
        %815 = vmatpush1.msra.mxu0 %v761
        %816 = vmatprep.subr.mxu0 0.0
        %817 = vmatpush1.msra.mxu0 %v762
        %818 = vmatprep.subr.mxu0 0.0
        %819 = vmatpush1.msra.mxu0 %v763
        %820 = vmatprep.subr.mxu0 0.0
        %821 = vmatpush1.msra.mxu0 %v764
        %822 = vmatprep.subr.mxu0 0.0
        %823 = vmatpush1.msra.mxu0 %v765
        %824 = vmatprep.subr.mxu0 0.0
        %825 = vmatpush1.msra.mxu0 %v766
        %826 = vmatprep.subr.mxu0 0.0
        %827 = vmatpush1.msra.mxu0 %v767
        %828 = vmatprep.subr.mxu0 0.0
        %829 = vmatpush1.msra.mxu0 %v768
        %830 = vmatprep.subr.mxu0 0.0
        %831 = vmatpush1.msra.mxu0 %v769
        %832 = vmatprep.subr.mxu0 0.0
        %833 = vmatpush1.msra.mxu0 %v770
        %834 = vmatprep.subr.mxu0 0.0
        %835 = vmatpush1.msra.mxu0 %v771
        %836 = vmatprep.mubr.f32.mxu0 %v353
        %837 = vmatmul.mubr.f32.gmra.mrb[0].mxu0 %v352
        %v838 = vpop.f32.mrb[0].mxu0
        %v839 = vadd.f32 0.0, %v838
        %v840 = vpop.f32.mrb[0].mxu0
        %841 = vmatprep.mubr.f32.mxu0 %v355
        %842 = vmatmul.mubr.f32.gmra.mrb[0].mxu0 %v354
        %v843 = vpop.f32.mrb[0].mxu0
        %v844 = vadd.f32 0.0, %v843
        %v845 = vpop.f32.mrb[0].mxu0
        %846 = vmatprep.mubr.f32.mxu0 %v357
        %847 = vmatmul.mubr.f32.gmra.mrb[0].mxu0 %v356
        %v848 = vpop.f32.mrb[0].mxu0
        %v849 = vadd.f32 0.0, %v848
        %v850 = vpop.f32.mrb[0].mxu0
        %851 = vmatprep.mubr.f32.mxu0 %v359
        %852 = vmatmul.mubr.f32.gmra.mrb[0].mxu0 %v358
        %v853 = vpop.f32.mrb[0].mxu0
        %v854 = vadd.f32 0.0, %v853
        %v855 = vpop.f32.mrb[0].mxu0
        %856 = vmatprep.mubr.f32.mxu0 %v361
        %857 = vmatmul.mubr.f32.gmra.mrb[0].mxu0 %v360
        %v858 = vpop.f32.mrb[0].mxu0
        %v859 = vadd.f32 0.0, %v858
        %v860 = vpop.f32.mrb[0].mxu0
        %861 = vmatprep.mubr.f32.mxu0 %v363
        %862 = vmatmul.mubr.f32.gmra.mrb[0].mxu0 %v362
        %v863 = vpop.f32.mrb[0].mxu0
        %v864 = vadd.f32 0.0, %v863
        %v865 = vpop.f32.mrb[0].mxu0
        %866 = vmatprep.mubr.f32.mxu0 %v365
        %867 = vmatmul.mubr.f32.gmra.mrb[0].mxu0 %v364
        %v868 = vpop.f32.mrb[0].mxu0
        %v869 = vadd.f32 0.0, %v868
        %v870 = vpop.f32.mrb[0].mxu0
        %871 = vmatprep.mubr.f32.mxu0 %v367
        %872 = vmatmul.mubr.f32.gmra.mrb[0].mxu0 %v366
        %v873 = vpop.f32.mrb[0].mxu0
        %v874 = vadd.f32 0.0, %v873
        %v875 = vpop.f32.mrb[0].mxu0
        %876 = vmatprep.mubr.f32.mxu0 %v369
        %877 = vmatmul.mubr.f32.gmra.mrb[0].mxu0 %v368
        %v878 = vpop.f32.mrb[0].mxu0
        %v879 = vadd.f32 0.0, %v878
        %v880 = vpop.f32.mrb[0].mxu0
        %881 = vmatprep.mubr.f32.mxu0 %v371
        %882 = vmatmul.mubr.f32.gmra.mrb[0].mxu0 %v370
        %v883 = vpop.f32.mrb[0].mxu0
        %v884 = vadd.f32 0.0, %v883
        %v885 = vpop.f32.mrb[0].mxu0
        %886 = vmatprep.mubr.f32.mxu0 %v373
        %887 = vmatmul.mubr.f32.gmra.mrb[0].mxu0 %v372
        %v888 = vpop.f32.mrb[0].mxu0
        %v889 = vadd.f32 0.0, %v888
        %v890 = vpop.f32.mrb[0].mxu0
        %891 = vmatprep.mubr.f32.mxu0 %v375
        %892 = vmatmul.mubr.f32.gmra.mrb[0].mxu0 %v374
        %v893 = vpop.f32.mrb[0].mxu0
        %v894 = vadd.f32 0.0, %v893
        %v895 = vpop.f32.mrb[0].mxu0
        %896 = vmatprep.mubr.f32.mxu0 %v377
        %897 = vmatmul.mubr.f32.gmra.mrb[0].mxu0 %v376
        %v898 = vpop.f32.mrb[0].mxu0
        %v899 = vadd.f32 0.0, %v898
        %v900 = vpop.f32.mrb[0].mxu0
        %901 = vmatprep.mubr.f32.mxu0 %v379
        %902 = vmatmul.mubr.f32.gmra.mrb[0].mxu0 %v378
        %v903 = vpop.f32.mrb[0].mxu0
        %v904 = vadd.f32 0.0, %v903
        %v905 = vpop.f32.mrb[0].mxu0
        %906 = vmatprep.mubr.f32.mxu0 %v381
        %907 = vmatmul.mubr.f32.gmra.mrb[0].mxu0 %v380
        %v908 = vpop.f32.mrb[0].mxu0
        %v909 = vadd.f32 0.0, %v908
        %v910 = vpop.f32.mrb[0].mxu0
        %911 = vmatprep.mubr.f32.mxu0 %v383
        %912 = vmatmul.mubr.f32.gmra.mrb[0].mxu0 %v382
        %v913 = vpop.f32.mrb[0].mxu0
        %v914 = vadd.f32 0.0, %v913
        %v915 = vpop.f32.mrb[0].mxu0
        %916 = vdwg.mxu0
        %s917 = scalar_lea.vmem %s1, 768
        %v918 = vld [vmem:[%s917] sm:$0xff]
        %v919 = vld [vmem:[%s917 + $0x8] sm:$0xff]
        %v920 = vld [vmem:[%s917 + $0x10] sm:$0xff]
        %v921 = vld [vmem:[%s917 + $0x18] sm:$0xff]
        %v922 = vld [vmem:[%s917 + $0x20] sm:$0xff]
        %v923 = vld [vmem:[%s917 + $0x28] sm:$0xff]
        %v924 = vld [vmem:[%s917 + $0x30] sm:$0xff]
        %v925 = vld [vmem:[%s917 + $0x38] sm:$0xff]
        %v926 = vld [vmem:[%s917 + $0x40] sm:$0xff]
        %v927 = vld [vmem:[%s917 + $0x48] sm:$0xff]
        %v928 = vld [vmem:[%s917 + $0x50] sm:$0xff]
        %v929 = vld [vmem:[%s917 + $0x58] sm:$0xff]
        %v930 = vld [vmem:[%s917 + $0x60] sm:$0xff]
        %v931 = vld [vmem:[%s917 + $0x68] sm:$0xff]
        %v932 = vld [vmem:[%s917 + $0x70] sm:$0xff]
        %v933 = vld [vmem:[%s917 + $0x78] sm:$0xff]
        %v934 = vld [vmem:[%s917 + $0x80] sm:$0xff]
        %v935 = vld [vmem:[%s917 + $0x88] sm:$0xff]
        %v936 = vld [vmem:[%s917 + $0x90] sm:$0xff]
        %v937 = vld [vmem:[%s917 + $0x98] sm:$0xff]
        %v938 = vld [vmem:[%s917 + $0xa0] sm:$0xff]
        %v939 = vld [vmem:[%s917 + $0xa8] sm:$0xff]
        %v940 = vld [vmem:[%s917 + $0xb0] sm:$0xff]
        %v941 = vld [vmem:[%s917 + $0xb8] sm:$0xff]
        %v942 = vld [vmem:[%s917 + $0xc0] sm:$0xff]
        %v943 = vld [vmem:[%s917 + $0xc8] sm:$0xff]
        %v944 = vld [vmem:[%s917 + $0xd0] sm:$0xff]
        %v945 = vld [vmem:[%s917 + $0xd8] sm:$0xff]
        %v946 = vld [vmem:[%s917 + $0xe0] sm:$0xff]
        %v947 = vld [vmem:[%s917 + $0xe8] sm:$0xff]
        %v948 = vld [vmem:[%s917 + $0xf0] sm:$0xff]
        %v949 = vld [vmem:[%s917 + $0xf8] sm:$0xff]
        %950 = vmatprep.subr.mxu0 0.0
        %951 = vmatpush1.msra.mxu0 %v918
        %952 = vmatprep.subr.mxu0 0.0
        %953 = vmatpush1.msra.mxu0 %v919
        %954 = vmatprep.subr.mxu0 0.0
        %955 = vmatpush1.msra.mxu0 %v920
        %956 = vmatprep.subr.mxu0 0.0
        %957 = vmatpush1.msra.mxu0 %v921
        %958 = vmatprep.subr.mxu0 0.0
        %959 = vmatpush1.msra.mxu0 %v922
        %960 = vmatprep.subr.mxu0 0.0
        %961 = vmatpush1.msra.mxu0 %v923
        %962 = vmatprep.subr.mxu0 0.0
        %963 = vmatpush1.msra.mxu0 %v924
        %964 = vmatprep.subr.mxu0 0.0
        %965 = vmatpush1.msra.mxu0 %v925
        %966 = vmatprep.subr.mxu0 0.0
        %967 = vmatpush1.msra.mxu0 %v926
        %968 = vmatprep.subr.mxu0 0.0
        %969 = vmatpush1.msra.mxu0 %v927
        %970 = vmatprep.subr.mxu0 0.0
        %971 = vmatpush1.msra.mxu0 %v928
        %972 = vmatprep.subr.mxu0 0.0
        %973 = vmatpush1.msra.mxu0 %v929
        %974 = vmatprep.subr.mxu0 0.0
        %975 = vmatpush1.msra.mxu0 %v930
        %976 = vmatprep.subr.mxu0 0.0
        %977 = vmatpush1.msra.mxu0 %v931
        %978 = vmatprep.subr.mxu0 0.0
        %979 = vmatpush1.msra.mxu0 %v932
        %980 = vmatprep.subr.mxu0 0.0
        %981 = vmatpush1.msra.mxu0 %v933
        %982 = vmatprep.subr.mxu0 0.0
        %983 = vmatpush1.msra.mxu0 %v934
        %984 = vmatprep.subr.mxu0 0.0
        %985 = vmatpush1.msra.mxu0 %v935
        %986 = vmatprep.subr.mxu0 0.0
        %987 = vmatpush1.msra.mxu0 %v936
        %988 = vmatprep.subr.mxu0 0.0
        %989 = vmatpush1.msra.mxu0 %v937
        %990 = vmatprep.subr.mxu0 0.0
        %991 = vmatpush1.msra.mxu0 %v938
        %992 = vmatprep.subr.mxu0 0.0
        %993 = vmatpush1.msra.mxu0 %v939
        %994 = vmatprep.subr.mxu0 0.0
        %995 = vmatpush1.msra.mxu0 %v940
        %996 = vmatprep.subr.mxu0 0.0
        %997 = vmatpush1.msra.mxu0 %v941
        %998 = vmatprep.subr.mxu0 0.0
        %999 = vmatpush1.msra.mxu0 %v942
        %1000 = vmatprep.subr.mxu0 0.0
        %1001 = vmatpush1.msra.mxu0 %v943
        %1002 = vmatprep.subr.mxu0 0.0
        %1003 = vmatpush1.msra.mxu0 %v944
        %1004 = vmatprep.subr.mxu0 0.0
        %1005 = vmatpush1.msra.mxu0 %v945
        %1006 = vmatprep.subr.mxu0 0.0
        %1007 = vmatpush1.msra.mxu0 %v946
        %1008 = vmatprep.subr.mxu0 0.0
        %1009 = vmatpush1.msra.mxu0 %v947
        %1010 = vmatprep.subr.mxu0 0.0
        %1011 = vmatpush1.msra.mxu0 %v948
        %1012 = vmatprep.subr.mxu0 0.0
        %1013 = vmatpush1.msra.mxu0 %v949
        %1014 = vmatprep.mubr.f32.mxu0 %v353
        %1015 = vmatmul.mubr.f32.gmra.mrb[0].mxu0 %v352
        %v1016 = vpop.f32.mrb[0].mxu0
        %v1017 = vadd.f32 0.0, %v1016
        %v1018 = vpop.f32.mrb[0].mxu0
        %1019 = vmatprep.mubr.f32.mxu0 %v355
        %1020 = vmatmul.mubr.f32.gmra.mrb[0].mxu0 %v354
        %v1021 = vpop.f32.mrb[0].mxu0
        %v1022 = vadd.f32 0.0, %v1021
        %v1023 = vpop.f32.mrb[0].mxu0
        %1024 = vmatprep.mubr.f32.mxu0 %v357
        %1025 = vmatmul.mubr.f32.gmra.mrb[0].mxu0 %v356
        %v1026 = vpop.f32.mrb[0].mxu0
        %v1027 = vadd.f32 0.0, %v1026
        %v1028 = vpop.f32.mrb[0].mxu0
        %1029 = vmatprep.mubr.f32.mxu0 %v359
        %1030 = vmatmul.mubr.f32.gmra.mrb[0].mxu0 %v358
        %v1031 = vpop.f32.mrb[0].mxu0
        %v1032 = vadd.f32 0.0, %v1031
        %v1033 = vpop.f32.mrb[0].mxu0
        %1034 = vmatprep.mubr.f32.mxu0 %v361
        %1035 = vmatmul.mubr.f32.gmra.mrb[0].mxu0 %v360
        %v1036 = vpop.f32.mrb[0].mxu0
        %v1037 = vadd.f32 0.0, %v1036
        %v1038 = vpop.f32.mrb[0].mxu0
        %1039 = vmatprep.mubr.f32.mxu0 %v363
        %1040 = vmatmul.mubr.f32.gmra.mrb[0].mxu0 %v362
        %v1041 = vpop.f32.mrb[0].mxu0
        %v1042 = vadd.f32 0.0, %v1041
        %v1043 = vpop.f32.mrb[0].mxu0
        %1044 = vmatprep.mubr.f32.mxu0 %v365
        %1045 = vmatmul.mubr.f32.gmra.mrb[0].mxu0 %v364
        %v1046 = vpop.f32.mrb[0].mxu0
        %v1047 = vadd.f32 0.0, %v1046
        %v1048 = vpop.f32.mrb[0].mxu0
        %1049 = vmatprep.mubr.f32.mxu0 %v367
        %1050 = vmatmul.mubr.f32.gmra.mrb[0].mxu0 %v366
        %v1051 = vpop.f32.mrb[0].mxu0
        %v1052 = vadd.f32 0.0, %v1051
        %v1053 = vpop.f32.mrb[0].mxu0
        %1054 = vmatprep.mubr.f32.mxu0 %v369
        %1055 = vmatmul.mubr.f32.gmra.mrb[0].mxu0 %v368
        %v1056 = vpop.f32.mrb[0].mxu0
        %v1057 = vadd.f32 0.0, %v1056
        %v1058 = vpop.f32.mrb[0].mxu0
        %1059 = vmatprep.mubr.f32.mxu0 %v371
        %1060 = vmatmul.mubr.f32.gmra.mrb[0].mxu0 %v370
        %v1061 = vpop.f32.mrb[0].mxu0
        %v1062 = vadd.f32 0.0, %v1061
        %v1063 = vpop.f32.mrb[0].mxu0
        %1064 = vmatprep.mubr.f32.mxu0 %v373
        %1065 = vmatmul.mubr.f32.gmra.mrb[0].mxu0 %v372
        %v1066 = vpop.f32.mrb[0].mxu0
        %v1067 = vadd.f32 0.0, %v1066
        %v1068 = vpop.f32.mrb[0].mxu0
        %1069 = vmatprep.mubr.f32.mxu0 %v375
        %1070 = vmatmul.mubr.f32.gmra.mrb[0].mxu0 %v374
        %v1071 = vpop.f32.mrb[0].mxu0
        %v1072 = vadd.f32 0.0, %v1071
        %v1073 = vpop.f32.mrb[0].mxu0
        %1074 = vmatprep.mubr.f32.mxu0 %v377
        %1075 = vmatmul.mubr.f32.gmra.mrb[0].mxu0 %v376
        %v1076 = vpop.f32.mrb[0].mxu0
        %v1077 = vadd.f32 0.0, %v1076
        %v1078 = vpop.f32.mrb[0].mxu0
        %1079 = vmatprep.mubr.f32.mxu0 %v379
        %1080 = vmatmul.mubr.f32.gmra.mrb[0].mxu0 %v378
        %v1081 = vpop.f32.mrb[0].mxu0
        %v1082 = vadd.f32 0.0, %v1081
        %v1083 = vpop.f32.mrb[0].mxu0
        %1084 = vmatprep.mubr.f32.mxu0 %v381
        %1085 = vmatmul.mubr.f32.gmra.mrb[0].mxu0 %v380
        %v1086 = vpop.f32.mrb[0].mxu0
        %v1087 = vadd.f32 0.0, %v1086
        %v1088 = vpop.f32.mrb[0].mxu0
        %1089 = vmatprep.mubr.f32.mxu0 %v383
        %1090 = vmatmul.mubr.f32.gmra.mrb[0].mxu0 %v382
        %v1091 = vpop.f32.mrb[0].mxu0
        %v1092 = vadd.f32 0.0, %v1091
        %v1093 = vpop.f32.mrb[0].mxu0
        %1094 = vdwg.mxu0
        %v1095 = vsub.f32 %v661, %v483
        %v1096 = vsub.f32 %v666, %v488
        %v1097 = vsub.f32 %v671, %v493
        %v1098 = vsub.f32 %v676, %v498
        %v1099 = vsub.f32 %v681, %v503
        %v1100 = vsub.f32 %v686, %v508
        %v1101 = vsub.f32 %v691, %v513
        %v1102 = vsub.f32 %v696, %v518
        %v1103 = vsub.f32 %v701, %v523
        %v1104 = vsub.f32 %v706, %v528
        %v1105 = vsub.f32 %v711, %v533
        %v1106 = vsub.f32 %v716, %v538
        %v1107 = vsub.f32 %v721, %v543
        %v1108 = vsub.f32 %v726, %v548
        %v1109 = vsub.f32 %v731, %v553
        %v1110 = vsub.f32 %v736, %v558
        %v1111 = vsub.f32 %v839, %v483
        %v1112 = vsub.f32 %v844, %v488
        %v1113 = vsub.f32 %v849, %v493
        %v1114 = vsub.f32 %v854, %v498
        %v1115 = vsub.f32 %v859, %v503
        %v1116 = vsub.f32 %v864, %v508
        %v1117 = vsub.f32 %v869, %v513
        %v1118 = vsub.f32 %v874, %v518
        %v1119 = vsub.f32 %v879, %v523
        %v1120 = vsub.f32 %v884, %v528
        %v1121 = vsub.f32 %v889, %v533
        %v1122 = vsub.f32 %v894, %v538
        %v1123 = vsub.f32 %v899, %v543
        %v1124 = vsub.f32 %v904, %v548
        %v1125 = vsub.f32 %v909, %v553
        %v1126 = vsub.f32 %v914, %v558
        %v1127 = vsub.f32 %v1017, %v483
        %v1128 = vsub.f32 %v1022, %v488
        %v1129 = vsub.f32 %v1027, %v493
        %v1130 = vsub.f32 %v1032, %v498
        %v1131 = vsub.f32 %v1037, %v503
        %v1132 = vsub.f32 %v1042, %v508
        %v1133 = vsub.f32 %v1047, %v513
        %v1134 = vsub.f32 %v1052, %v518
        %v1135 = vsub.f32 %v1057, %v523
        %v1136 = vsub.f32 %v1062, %v528
        %v1137 = vsub.f32 %v1067, %v533
        %v1138 = vsub.f32 %v1072, %v538
        %v1139 = vsub.f32 %v1077, %v543
        %v1140 = vsub.f32 %v1082, %v548
        %v1141 = vsub.f32 %v1087, %v553
        %v1142 = vsub.f32 %v1092, %v558
        %v1143 = vadd.f32 %v1095, %v1111
        %v1144 = vadd.f32 %v1096, %v1112
        %v1145 = vadd.f32 %v1097, %v1113
        %v1146 = vadd.f32 %v1098, %v1114
        %v1147 = vadd.f32 %v1099, %v1115
        %v1148 = vadd.f32 %v1100, %v1116
        %v1149 = vadd.f32 %v1101, %v1117
        %v1150 = vadd.f32 %v1102, %v1118
        %v1151 = vadd.f32 %v1103, %v1119
        %v1152 = vadd.f32 %v1104, %v1120
        %v1153 = vadd.f32 %v1105, %v1121
        %v1154 = vadd.f32 %v1106, %v1122
        %v1155 = vadd.f32 %v1107, %v1123
        %v1156 = vadd.f32 %v1108, %v1124
        %v1157 = vadd.f32 %v1109, %v1125
        %v1158 = vadd.f32 %v1110, %v1126
        %v1159 = vadd.f32 %v1143, %v1127
        %v1160 = vadd.f32 %v1144, %v1128
        %v1161 = vadd.f32 %v1145, %v1129
        %v1162 = vadd.f32 %v1146, %v1130
        %v1163 = vadd.f32 %v1147, %v1131
        %v1164 = vadd.f32 %v1148, %v1132
        %v1165 = vadd.f32 %v1149, %v1133
        %v1166 = vadd.f32 %v1150, %v1134
        %v1167 = vadd.f32 %v1151, %v1135
        %v1168 = vadd.f32 %v1152, %v1136
        %v1169 = vadd.f32 %v1153, %v1137
        %v1170 = vadd.f32 %v1154, %v1138
        %v1171 = vadd.f32 %v1155, %v1139
        %v1172 = vadd.f32 %v1156, %v1140
        %v1173 = vadd.f32 %v1157, %v1141
        %v1174 = vadd.f32 %v1158, %v1142
        %v1175 = vadd.f32 %v1159, %v483
        %v1176 = vadd.f32 %v1160, %v488
        %v1177 = vadd.f32 %v1161, %v493
        %v1178 = vadd.f32 %v1162, %v498
        %v1179 = vadd.f32 %v1163, %v503
        %v1180 = vadd.f32 %v1164, %v508
        %v1181 = vadd.f32 %v1165, %v513
        %v1182 = vadd.f32 %v1166, %v518
        %v1183 = vadd.f32 %v1167, %v523
        %v1184 = vadd.f32 %v1168, %v528
        %v1185 = vadd.f32 %v1169, %v533
        %v1186 = vadd.f32 %v1170, %v538
        %v1187 = vadd.f32 %v1171, %v543
        %v1188 = vadd.f32 %v1172, %v548
        %v1189 = vadd.f32 %v1173, %v553
        %v1190 = vadd.f32 %v1174, %v558
        %vm1191 = vcmask 523264
        %v1192 = vsel %vm1191, %v1175, 0.0
        %1193 = vadd.xlane.f32.xlu0 %v1192
        %v1194 = vpop.xlane.xlu0 %1193
        %v1195 = vsel %vm1191, %v1176, 0.0
        %1196 = vadd.xlane.f32.xlu0 %v1195
        %v1197 = vpop.xlane.xlu0 %1196
        %v1198 = vsel %vm1191, %v1177, 0.0
        %1199 = vadd.xlane.f32.xlu0 %v1198
        %v1200 = vpop.xlane.xlu0 %1199
        %v1201 = vsel %vm1191, %v1178, 0.0
        %1202 = vadd.xlane.f32.xlu0 %v1201
        %v1203 = vpop.xlane.xlu0 %1202
        %v1204 = vsel %vm1191, %v1179, 0.0
        %1205 = vadd.xlane.f32.xlu0 %v1204
        %v1206 = vpop.xlane.xlu0 %1205
        %v1207 = vsel %vm1191, %v1180, 0.0
        %1208 = vadd.xlane.f32.xlu0 %v1207
        %v1209 = vpop.xlane.xlu0 %1208
        %v1210 = vsel %vm1191, %v1181, 0.0
        %1211 = vadd.xlane.f32.xlu0 %v1210
        %v1212 = vpop.xlane.xlu0 %1211
        %v1213 = vsel %vm1191, %v1182, 0.0
        %1214 = vadd.xlane.f32.xlu0 %v1213
        %v1215 = vpop.xlane.xlu0 %1214
        %v1216 = vsel %vm1191, %v1183, 0.0
        %1217 = vadd.xlane.f32.xlu0 %v1216
        %v1218 = vpop.xlane.xlu0 %1217
        %v1219 = vsel %vm1191, %v1184, 0.0
        %1220 = vadd.xlane.f32.xlu0 %v1219
        %v1221 = vpop.xlane.xlu0 %1220
        %v1222 = vsel %vm1191, %v1185, 0.0
        %1223 = vadd.xlane.f32.xlu0 %v1222
        %v1224 = vpop.xlane.xlu0 %1223
        %v1225 = vsel %vm1191, %v1186, 0.0
        %1226 = vadd.xlane.f32.xlu0 %v1225
        %v1227 = vpop.xlane.xlu0 %1226
        %v1228 = vsel %vm1191, %v1187, 0.0
        %1229 = vadd.xlane.f32.xlu0 %v1228
        %v1230 = vpop.xlane.xlu0 %1229
        %v1231 = vsel %vm1191, %v1188, 0.0
        %1232 = vadd.xlane.f32.xlu0 %v1231
        %v1233 = vpop.xlane.xlu0 %1232
        %v1234 = vsel %vm1191, %v1189, 0.0
        %1235 = vadd.xlane.f32.xlu0 %v1234
        %v1236 = vpop.xlane.xlu0 %1235
        %v1237 = vsel %vm1191, %v1190, 0.0
        %1238 = vadd.xlane.f32.xlu0 %v1237
        %v1239 = vpop.xlane.xlu0 %1238
        %v1240 = vmul.f32 %v1194, 0.015625
        %v1241 = vmul.f32 %v1197, 0.015625
        %v1242 = vmul.f32 %v1200, 0.015625
        %v1243 = vmul.f32 %v1203, 0.015625
        %v1244 = vmul.f32 %v1206, 0.015625
        %v1245 = vmul.f32 %v1209, 0.015625
        %v1246 = vmul.f32 %v1212, 0.015625
        %v1247 = vmul.f32 %v1215, 0.015625
        %v1248 = vmul.f32 %v1218, 0.015625
        %v1249 = vmul.f32 %v1221, 0.015625
        %v1250 = vmul.f32 %v1224, 0.015625
        %v1251 = vmul.f32 %v1227, 0.015625
        %v1252 = vmul.f32 %v1230, 0.015625
        %v1253 = vmul.f32 %v1233, 0.015625
        %v1254 = vmul.f32 %v1236, 0.015625
        %v1255 = vmul.f32 %v1239, 0.015625
        %v1256 = vld [vmem:[%s3] sm:$0xff]
        %v1257 = vld [vmem:[%s3 + $0x8] sm:$0xff]
        %v1258 = vld [vmem:[%s3 + $0x10] sm:$0xff]
        %v1259 = vld [vmem:[%s3 + $0x18] sm:$0xff]
        %v1260 = vld [vmem:[%s4] sm:$0x1]
        %v1262 = vlaneseq
        %v1263 = vshrl.u32 %v1262, 7
        %v1264 = vsub.s32 0, %v1263
        %v1265 = vrot.slane %v1260, %v1264
        %v1283 = vlaneseq
        %v1284 = vand.u32 %v1283, 127
        %v1285 = vlaneseq
        %v1286 = vshrl.u32 %v1285, 7
        %v1287 = vsub.s32 %v1284, %v1286
        %v1288 = vrot.slane %v1240, %v1287
        %v1289 = vadd.s32 %v1284, 4294967288
        %v1290 = vlaneseq
        %v1291 = vshrl.u32 %v1290, 7
        %v1292 = vsub.s32 %v1289, %v1291
        %v1293 = vrot.slane %v1241, %v1292
        %vm1294 = vcmask 130112
        %v1295 = vsel %vm1294, %v1293, %v1288
        %v1296 = vadd.s32 %v1284, 4294967280
        %v1297 = vlaneseq
        %v1298 = vshrl.u32 %v1297, 7
        %v1299 = vsub.s32 %v1296, %v1298
        %v1300 = vrot.slane %v1242, %v1299
        %vm1301 = vcmask 195712
        %v1302 = vsel %vm1301, %v1300, %v1295
        %v1303 = vadd.s32 %v1284, 4294967272
        %v1304 = vlaneseq
        %v1305 = vshrl.u32 %v1304, 7
        %v1306 = vsub.s32 %v1303, %v1305
        %v1307 = vrot.slane %v1243, %v1306
        %vm1308 = vcmask 261312
        %v1309 = vsel %vm1308, %v1307, %v1302
        %v1310 = vlaneseq
        %v1311 = vshrl.u32 %v1310, 7
        %v1312 = vsub.s32 %v1284, %v1311
        %v1313 = vrot.slane %v1244, %v1312
        %v1314 = vlaneseq
        %v1315 = vshrl.u32 %v1314, 7
        %v1316 = vsub.s32 %v1289, %v1315
        %v1317 = vrot.slane %v1245, %v1316
        %v1318 = vsel %vm1294, %v1317, %v1313
        %v1319 = vlaneseq
        %v1320 = vshrl.u32 %v1319, 7
        %v1321 = vsub.s32 %v1296, %v1320
        %v1322 = vrot.slane %v1246, %v1321
        %v1323 = vsel %vm1301, %v1322, %v1318
        %v1324 = vlaneseq
        %v1325 = vshrl.u32 %v1324, 7
        %v1326 = vsub.s32 %v1303, %v1325
        %v1327 = vrot.slane %v1247, %v1326
        %v1328 = vsel %vm1308, %v1327, %v1323
        %v1329 = vlaneseq
        %v1330 = vshrl.u32 %v1329, 7
        %v1331 = vsub.s32 %v1284, %v1330
        %v1332 = vrot.slane %v1248, %v1331
        %v1333 = vlaneseq
        %v1334 = vshrl.u32 %v1333, 7
        %v1335 = vsub.s32 %v1289, %v1334
        %v1336 = vrot.slane %v1249, %v1335
        %v1337 = vsel %vm1294, %v1336, %v1332
        %v1338 = vlaneseq
        %v1339 = vshrl.u32 %v1338, 7
        %v1340 = vsub.s32 %v1296, %v1339
        %v1341 = vrot.slane %v1250, %v1340
        %v1342 = vsel %vm1301, %v1341, %v1337
        %v1343 = vlaneseq
        %v1344 = vshrl.u32 %v1343, 7
        %v1345 = vsub.s32 %v1303, %v1344
        %v1346 = vrot.slane %v1251, %v1345
        %v1347 = vsel %vm1308, %v1346, %v1342
        %v1348 = vlaneseq
        %v1349 = vshrl.u32 %v1348, 7
        %v1350 = vsub.s32 %v1284, %v1349
        %v1351 = vrot.slane %v1252, %v1350
        %v1352 = vlaneseq
        %v1353 = vshrl.u32 %v1352, 7
        %v1354 = vsub.s32 %v1289, %v1353
        %v1355 = vrot.slane %v1253, %v1354
        %v1356 = vsel %vm1294, %v1355, %v1351
        %v1357 = vlaneseq
        %v1358 = vshrl.u32 %v1357, 7
        %v1359 = vsub.s32 %v1296, %v1358
        %v1360 = vrot.slane %v1254, %v1359
        %v1361 = vsel %vm1301, %v1360, %v1356
        %v1362 = vlaneseq
        %v1363 = vshrl.u32 %v1362, 7
        %v1364 = vsub.s32 %v1303, %v1363
        %v1365 = vrot.slane %v1255, %v1364
        %v1366 = vsel %vm1308, %v1365, %v1361
        %vm1367 = vcmask 1041409
        %v1368 = vsel %vm1367, %v1328, %v1309
        %vm1369 = vcmask 1042434
        %v1370 = vsel %vm1369, %v1347, %v1368
        %vm1371 = vcmask 1043459
        %v1372 = vsel %vm1371, %v1366, %v1370
        %vm1373 = vcmask 261120
        %v1374 = vsel %vm1373, %v1372, 0
        %1376 = vmatprep.subr.mxu0 0.0
        %1377 = vmatpush1.msra.mxu0 %v1256
        %1378 = vmatprep.subr.mxu0 0.0
        %1379 = vmatpush1.msra.mxu0 %v1257
        %1380 = vmatprep.subr.mxu0 0.0
        %1381 = vmatpush1.msra.mxu0 %v1258
        %1382 = vmatprep.subr.mxu0 0.0
        %1383 = vmatpush1.msra.mxu0 %v1259
        %1384 = vmatprep.subr.mxu0 0.0
        %1385 = vmatpush1.msra.mxu0 0.0
        %1386 = vmatprep.subr.mxu0 0.0
        %1387 = vmatpush1.msra.mxu0 0.0
        %1388 = vmatprep.subr.mxu0 0.0
        %1389 = vmatpush1.msra.mxu0 0.0
        %1390 = vmatprep.subr.mxu0 0.0
        %1391 = vmatpush1.msra.mxu0 0.0
        %1392 = vmatprep.subr.mxu0 0.0
        %1393 = vmatpush1.msra.mxu0 0.0
        %1394 = vmatprep.subr.mxu0 0.0
        %1395 = vmatpush1.msra.mxu0 0.0
        %1396 = vmatprep.subr.mxu0 0.0
        %1397 = vmatpush1.msra.mxu0 0.0
        %1398 = vmatprep.subr.mxu0 0.0
        %1399 = vmatpush1.msra.mxu0 0.0
        %1400 = vmatprep.subr.mxu0 0.0
        %1401 = vmatpush1.msra.mxu0 0.0
        %1402 = vmatprep.subr.mxu0 0.0
        %1403 = vmatpush1.msra.mxu0 0.0
        %1404 = vmatprep.subr.mxu0 0.0
        %1405 = vmatpush1.msra.mxu0 0.0
        %1406 = vmatprep.subr.mxu0 0.0
        %1407 = vmatpush1.msra.mxu0 0.0
        %1408 = vmatprep.subr.mxu0 0.0
        %1409 = vmatpush1.msra.mxu0 0.0
        %1410 = vmatprep.subr.mxu0 0.0
        %1411 = vmatpush1.msra.mxu0 0.0
        %1412 = vmatprep.subr.mxu0 0.0
        %1413 = vmatpush1.msra.mxu0 0.0
        %1414 = vmatprep.subr.mxu0 0.0
        %1415 = vmatpush1.msra.mxu0 0.0
        %1416 = vmatprep.subr.mxu0 0.0
        %1417 = vmatpush1.msra.mxu0 0.0
        %1418 = vmatprep.subr.mxu0 0.0
        %1419 = vmatpush1.msra.mxu0 0.0
        %1420 = vmatprep.subr.mxu0 0.0
        %1421 = vmatpush1.msra.mxu0 0.0
        %1422 = vmatprep.subr.mxu0 0.0
        %1423 = vmatpush1.msra.mxu0 0.0
        %1424 = vmatprep.subr.mxu0 0.0
        %1425 = vmatpush1.msra.mxu0 0.0
        %1426 = vmatprep.subr.mxu0 0.0
        %1427 = vmatpush1.msra.mxu0 0.0
        %1428 = vmatprep.subr.mxu0 0.0
        %1429 = vmatpush1.msra.mxu0 0.0
        %1430 = vmatprep.subr.mxu0 0.0
        %1431 = vmatpush1.msra.mxu0 0.0
        %1432 = vmatprep.subr.mxu0 0.0
        %1433 = vmatpush1.msra.mxu0 0.0
        %1434 = vmatprep.subr.mxu0 0.0
        %1435 = vmatpush1.msra.mxu0 0.0
        %1436 = vmatprep.subr.mxu0 0.0
        %1437 = vmatpush1.msra.mxu0 0.0
        %1438 = vmatprep.subr.mxu0 0.0
        %1439 = vmatpush1.msra.mxu0 0.0
        %1440 = vmatprep.mubr.f32.mxu0 0.0
        %1441 = vmatmul.mubr.f32.gmra.mrb[0].mxu0 %v1374
        %v1442 = vpop.f32.mrb[0].mxu0
        %v1443 = vadd.f32 %v1265, %v1442
        %v1444 = vpop.f32.mrb[0].mxu0
        %1445 = vdwg.mxu0
        %v1446 = vmax.f32 %v1443, 0.0
        %v1447 = vld [vmem:[%s5] sm:$0x3]
        %v1448 = vld [vmem:[%s6] sm:$0x1]
        %v1450 = vlaneseq
        %v1451 = vshrl.u32 %v1450, 7
        %v1452 = vsub.s32 0, %v1451
        %v1453 = vrot.slane %v1448, %v1452
        %vm1455 = vcmask 15360
        %v1457 = vsel %vm1455, %v1446, 0
        %vm1459 = vcmask 1041408
        %v1461 = vsel %vm1459, %v1447, 0
        %1463 = vmatprep.subr.mxu0 0.0
        %1464 = vmatpush1.msra.mxu0 %v1461
        %1465 = vmatprep.subr.mxu0 0.0
        %1466 = vmatpush1.msra.mxu0 0.0
        %1467 = vmatprep.subr.mxu0 0.0
        %1468 = vmatpush1.msra.mxu0 0.0
        %1469 = vmatprep.subr.mxu0 0.0
        %1470 = vmatpush1.msra.mxu0 0.0
        %1471 = vmatprep.subr.mxu0 0.0
        %1472 = vmatpush1.msra.mxu0 0.0
        %1473 = vmatprep.subr.mxu0 0.0
        %1474 = vmatpush1.msra.mxu0 0.0
        %1475 = vmatprep.subr.mxu0 0.0
        %1476 = vmatpush1.msra.mxu0 0.0
        %1477 = vmatprep.subr.mxu0 0.0
        %1478 = vmatpush1.msra.mxu0 0.0
        %1479 = vmatprep.subr.mxu0 0.0
        %1480 = vmatpush1.msra.mxu0 0.0
        %1481 = vmatprep.subr.mxu0 0.0
        %1482 = vmatpush1.msra.mxu0 0.0
        %1483 = vmatprep.subr.mxu0 0.0
        %1484 = vmatpush1.msra.mxu0 0.0
        %1485 = vmatprep.subr.mxu0 0.0
        %1486 = vmatpush1.msra.mxu0 0.0
        %1487 = vmatprep.subr.mxu0 0.0
        %1488 = vmatpush1.msra.mxu0 0.0
        %1489 = vmatprep.subr.mxu0 0.0
        %1490 = vmatpush1.msra.mxu0 0.0
        %1491 = vmatprep.subr.mxu0 0.0
        %1492 = vmatpush1.msra.mxu0 0.0
        %1493 = vmatprep.subr.mxu0 0.0
        %1494 = vmatpush1.msra.mxu0 0.0
        %1495 = vmatprep.subr.mxu0 0.0
        %1496 = vmatpush1.msra.mxu0 0.0
        %1497 = vmatprep.subr.mxu0 0.0
        %1498 = vmatpush1.msra.mxu0 0.0
        %1499 = vmatprep.subr.mxu0 0.0
        %1500 = vmatpush1.msra.mxu0 0.0
        %1501 = vmatprep.subr.mxu0 0.0
        %1502 = vmatpush1.msra.mxu0 0.0
        %1503 = vmatprep.subr.mxu0 0.0
        %1504 = vmatpush1.msra.mxu0 0.0
        %1505 = vmatprep.subr.mxu0 0.0
        %1506 = vmatpush1.msra.mxu0 0.0
        %1507 = vmatprep.subr.mxu0 0.0
        %1508 = vmatpush1.msra.mxu0 0.0
        %1509 = vmatprep.subr.mxu0 0.0
        %1510 = vmatpush1.msra.mxu0 0.0
        %1511 = vmatprep.subr.mxu0 0.0
        %1512 = vmatpush1.msra.mxu0 0.0
        %1513 = vmatprep.subr.mxu0 0.0
        %1514 = vmatpush1.msra.mxu0 0.0
        %1515 = vmatprep.subr.mxu0 0.0
        %1516 = vmatpush1.msra.mxu0 0.0
        %1517 = vmatprep.subr.mxu0 0.0
        %1518 = vmatpush1.msra.mxu0 0.0
        %1519 = vmatprep.subr.mxu0 0.0
        %1520 = vmatpush1.msra.mxu0 0.0
        %1521 = vmatprep.subr.mxu0 0.0
        %1522 = vmatpush1.msra.mxu0 0.0
        %1523 = vmatprep.subr.mxu0 0.0
        %1524 = vmatpush1.msra.mxu0 0.0
        %1525 = vmatprep.subr.mxu0 0.0
        %1526 = vmatpush1.msra.mxu0 0.0
        %1527 = vmatprep.mubr.f32.mxu0 0.0
        %1528 = vmatmul.mubr.f32.gmra.mrb[0].mxu0 %v1457
        %v1529 = vpop.f32.mrb[0].mxu0
        %v1530 = vadd.f32 %v1453, %v1529
        %v1531 = vpop.f32.mrb[0].mxu0
        %1532 = vdwg.mxu0
        %v1533 = vxor.u32 %v1530, 2147483648
        %v1534 = vmul.f32 %v1533, 1.442695
        %v1535 = vpow.pop %v1534
        %v1536 = vadd.f32 %v1535, 1.0
        %v1537 = vrcp.pop %v1536
        %v1538 = vmul.f32 1.0, %v1537
        %v1539 = vmax.f32 %v1095, %v1111
        %v1540 = vmax.f32 %v1096, %v1112
        %v1541 = vmax.f32 %v1097, %v1113
        %v1542 = vmax.f32 %v1098, %v1114
        %v1543 = vmax.f32 %v1099, %v1115
        %v1544 = vmax.f32 %v1100, %v1116
        %v1545 = vmax.f32 %v1101, %v1117
        %v1546 = vmax.f32 %v1102, %v1118
        %v1547 = vmax.f32 %v1103, %v1119
        %v1548 = vmax.f32 %v1104, %v1120
        %v1549 = vmax.f32 %v1105, %v1121
        %v1550 = vmax.f32 %v1106, %v1122
        %v1551 = vmax.f32 %v1107, %v1123
        %v1552 = vmax.f32 %v1108, %v1124
        %v1553 = vmax.f32 %v1109, %v1125
        %v1554 = vmax.f32 %v1110, %v1126
        %v1555 = vmax.f32 %v1539, %v1127
        %v1556 = vmax.f32 %v1540, %v1128
        %v1557 = vmax.f32 %v1541, %v1129
        %v1558 = vmax.f32 %v1542, %v1130
        %v1559 = vmax.f32 %v1543, %v1131
        %v1560 = vmax.f32 %v1544, %v1132
        %v1561 = vmax.f32 %v1545, %v1133
        %v1562 = vmax.f32 %v1546, %v1134
        %v1563 = vmax.f32 %v1547, %v1135
        %v1564 = vmax.f32 %v1548, %v1136
        %v1565 = vmax.f32 %v1549, %v1137
        %v1566 = vmax.f32 %v1550, %v1138
        %v1567 = vmax.f32 %v1551, %v1139
        %v1568 = vmax.f32 %v1552, %v1140
        %v1569 = vmax.f32 %v1553, %v1141
        %v1570 = vmax.f32 %v1554, %v1142
        %v1571 = vsel %vm1191, %v1159, 0.0
        %v1572 = vsel %vm1191, %v1160, 0.0
        %v1573 = vadd.f32 %v1571, %v1572
        %v1574 = vsel %vm1191, %v1161, 0.0
        %v1575 = vadd.f32 %v1573, %v1574
        %v1576 = vsel %vm1191, %v1162, 0.0
        %v1577 = vadd.f32 %v1575, %v1576
        %v1578 = vrot.slane %v1577, 4
        %v1579 = vadd.f32 %v1577, %v1578
        %v1580 = vrot.slane %v1579, 2
        %v1581 = vadd.f32 %v1579, %v1580
        %v1582 = vrot.slane %v1581, 1
        %v1583 = vadd.f32 %v1581, %v1582
        %v1584 = vsel %vm1191, %v1163, 0.0
        %v1585 = vsel %vm1191, %v1164, 0.0
        %v1586 = vadd.f32 %v1584, %v1585
        %v1587 = vsel %vm1191, %v1165, 0.0
        %v1588 = vadd.f32 %v1586, %v1587
        %v1589 = vsel %vm1191, %v1166, 0.0
        %v1590 = vadd.f32 %v1588, %v1589
        %v1591 = vrot.slane %v1590, 4
        %v1592 = vadd.f32 %v1590, %v1591
        %v1593 = vrot.slane %v1592, 2
        %v1594 = vadd.f32 %v1592, %v1593
        %v1595 = vrot.slane %v1594, 1
        %v1596 = vadd.f32 %v1594, %v1595
        %v1597 = vsel %vm1191, %v1167, 0.0
        %v1598 = vsel %vm1191, %v1168, 0.0
        %v1599 = vadd.f32 %v1597, %v1598
        %v1600 = vsel %vm1191, %v1169, 0.0
        %v1601 = vadd.f32 %v1599, %v1600
        %v1602 = vsel %vm1191, %v1170, 0.0
        %v1603 = vadd.f32 %v1601, %v1602
        %v1604 = vrot.slane %v1603, 4
        %v1605 = vadd.f32 %v1603, %v1604
        %v1606 = vrot.slane %v1605, 2
        %v1607 = vadd.f32 %v1605, %v1606
        %v1608 = vrot.slane %v1607, 1
        %v1609 = vadd.f32 %v1607, %v1608
        %v1610 = vsel %vm1191, %v1171, 0.0
        %v1611 = vsel %vm1191, %v1172, 0.0
        %v1612 = vadd.f32 %v1610, %v1611
        %v1613 = vsel %vm1191, %v1173, 0.0
        %v1614 = vadd.f32 %v1612, %v1613
        %v1615 = vsel %vm1191, %v1174, 0.0
        %v1616 = vadd.f32 %v1614, %v1615
        %v1617 = vrot.slane %v1616, 4
        %v1618 = vadd.f32 %v1616, %v1617
        %v1619 = vrot.slane %v1618, 2
        %v1620 = vadd.f32 %v1618, %v1619
        %v1621 = vrot.slane %v1620, 1
        %v1622 = vadd.f32 %v1620, %v1621
        %v1623 = vmul.f32 %v1583, 0.010416667
        %v1624 = vmul.f32 %v1596, 0.010416667
        %v1625 = vmul.f32 %v1609, 0.010416667
        %v1626 = vmul.f32 %v1622, 0.010416667
        %v1627 = vsel %vm1191, %v1555, -inf
        %v1628 = vsel %vm1191, %v1556, -inf
        %v1629 = vmax.f32 %v1627, %v1628
        %v1630 = vsel %vm1191, %v1557, -inf
        %v1631 = vmax.f32 %v1629, %v1630
        %v1632 = vsel %vm1191, %v1558, -inf
        %v1633 = vmax.f32 %v1631, %v1632
        %v1634 = vrot.slane %v1633, 4
        %v1635 = vmax.f32 %v1633, %v1634
        %v1636 = vrot.slane %v1635, 2
        %v1637 = vmax.f32 %v1635, %v1636
        %v1638 = vrot.slane %v1637, 1
        %v1639 = vmax.f32 %v1637, %v1638
        %v1640 = vsel %vm1191, %v1559, -inf
        %v1641 = vsel %vm1191, %v1560, -inf
        %v1642 = vmax.f32 %v1640, %v1641
        %v1643 = vsel %vm1191, %v1561, -inf
        %v1644 = vmax.f32 %v1642, %v1643
        %v1645 = vsel %vm1191, %v1562, -inf
        %v1646 = vmax.f32 %v1644, %v1645
        %v1647 = vrot.slane %v1646, 4
        %v1648 = vmax.f32 %v1646, %v1647
        %v1649 = vrot.slane %v1648, 2
        %v1650 = vmax.f32 %v1648, %v1649
        %v1651 = vrot.slane %v1650, 1
        %v1652 = vmax.f32 %v1650, %v1651
        %v1653 = vsel %vm1191, %v1563, -inf
        %v1654 = vsel %vm1191, %v1564, -inf
        %v1655 = vmax.f32 %v1653, %v1654
        %v1656 = vsel %vm1191, %v1565, -inf
        %v1657 = vmax.f32 %v1655, %v1656
        %v1658 = vsel %vm1191, %v1566, -inf
        %v1659 = vmax.f32 %v1657, %v1658
        %v1660 = vrot.slane %v1659, 4
        %v1661 = vmax.f32 %v1659, %v1660
        %v1662 = vrot.slane %v1661, 2
        %v1663 = vmax.f32 %v1661, %v1662
        %v1664 = vrot.slane %v1663, 1
        %v1665 = vmax.f32 %v1663, %v1664
        %v1666 = vsel %vm1191, %v1567, -inf
        %v1667 = vsel %vm1191, %v1568, -inf
        %v1668 = vmax.f32 %v1666, %v1667
        %v1669 = vsel %vm1191, %v1569, -inf
        %v1670 = vmax.f32 %v1668, %v1669
        %v1671 = vsel %vm1191, %v1570, -inf
        %v1672 = vmax.f32 %v1670, %v1671
        %v1673 = vrot.slane %v1672, 4
        %v1674 = vmax.f32 %v1672, %v1673
        %v1675 = vrot.slane %v1674, 2
        %v1676 = vmax.f32 %v1674, %v1675
        %v1677 = vrot.slane %v1676, 1
        %v1678 = vmax.f32 %v1676, %v1677
        %s1679 = sld [smem:[#allocation3]]
        %v1680 = vstv %s1679
        %v1681 = vmul.f32 %v1680, %v1623
        %v1682 = vmul.f32 %v1680, %v1624
        %v1683 = vmul.f32 %v1680, %v1625
        %v1684 = vmul.f32 %v1680, %v1626
        %s1685 = sld [smem:[#allocation3 + $0x1]]
        %v1686 = vstv %s1685
        %v1687 = vmul.f32 %v1686, %v1639
        %v1688 = vmul.f32 %v1686, %v1652
        %v1689 = vmul.f32 %v1686, %v1665
        %v1690 = vmul.f32 %v1686, %v1678
        %v1691 = vadd.f32 %v1681, %v1687
        %v1692 = vadd.f32 %v1682, %v1688
        %v1693 = vadd.f32 %v1683, %v1689
        %v1694 = vadd.f32 %v1684, %v1690
        %s1695 = sld [smem:[#allocation2]]
        %v1696 = vstv %s1695
        %v1697 = vadd.f32 %v1691, %v1696
        %v1698 = vadd.f32 %v1692, %v1696
        %v1699 = vadd.f32 %v1693, %v1696
        %v1700 = vadd.f32 %v1694, %v1696
        %v1701 = vxor.u32 %v1697, 2147483648
        %v1702 = vxor.u32 %v1698, 2147483648
        %v1703 = vxor.u32 %v1699, 2147483648
        %v1704 = vxor.u32 %v1700, 2147483648
        %v1705 = vmul.f32 %v1701, 1.442695
        %v1706 = vpow.pop %v1705
        %v1707 = vmul.f32 %v1702, 1.442695
        %v1708 = vpow.pop %v1707
        %v1709 = vmul.f32 %v1703, 1.442695
        %v1710 = vpow.pop %v1709
        %v1711 = vmul.f32 %v1704, 1.442695
        %v1712 = vpow.pop %v1711
        %v1713 = vadd.f32 %v1706, 1.0
        %v1714 = vadd.f32 %v1708, 1.0
        %v1715 = vadd.f32 %v1710, 1.0
        %v1716 = vadd.f32 %v1712, 1.0
        %v1717 = vrcp.pop %v1713
        %v1718 = vmul.f32 1.0, %v1717
        %v1719 = vrcp.pop %v1714
        %v1720 = vmul.f32 1.0, %v1719
        %v1721 = vrcp.pop %v1715
        %v1722 = vmul.f32 1.0, %v1721
        %v1723 = vrcp.pop %v1716
        %v1724 = vmul.f32 1.0, %v1723
        %v1725 = vld [vmem:[%s2] sm:$0xff]
        %v1726 = vld [vmem:[%s2 + $0x8] sm:$0xff]
        %v1727 = vld [vmem:[%s2 + $0x10] sm:$0xff]
        %v1728 = vld [vmem:[%s2 + $0x18] sm:$0xff]
        %v1729 = vld [vmem:[%s2 + $0x20] sm:$0xff]
        %v1730 = vld [vmem:[%s2 + $0x28] sm:$0xff]
        %v1731 = vld [vmem:[%s2 + $0x30] sm:$0xff]
        %v1732 = vld [vmem:[%s2 + $0x38] sm:$0xff]
        %v1733 = vld [vmem:[%s2 + $0x40] sm:$0xff]
        %v1734 = vld [vmem:[%s2 + $0x48] sm:$0xff]
        %v1735 = vld [vmem:[%s2 + $0x50] sm:$0xff]
        %v1736 = vld [vmem:[%s2 + $0x58] sm:$0xff]
        %v1737 = vld [vmem:[%s2 + $0x60] sm:$0xff]
        %v1738 = vld [vmem:[%s2 + $0x68] sm:$0xff]
        %v1739 = vld [vmem:[%s2 + $0x70] sm:$0xff]
        %v1740 = vld [vmem:[%s2 + $0x78] sm:$0xff]
        %v1745 = vsel %vm1367, %v1720, %v1718
        %v1746 = vsel %vm1369, %v1722, %v1745
        %v1747 = vsel %vm1371, %v1724, %v1746
        %v1748 = vsel %vm1191, %v1747, 0
        %1750 = vmatprep.subr.mxu0 %v1726
        %1751 = vmatpush1.msra.mxu0 %v1725
        %1752 = vmatprep.subr.mxu0 %v1728
        %1753 = vmatpush1.msra.mxu0 %v1727
        %1754 = vmatprep.subr.mxu0 %v1730
        %1755 = vmatpush1.msra.mxu0 %v1729
        %1756 = vmatprep.subr.mxu0 %v1732
        %1757 = vmatpush1.msra.mxu0 %v1731
        %1758 = vmatprep.subr.mxu0 %v1734
        %1759 = vmatpush1.msra.mxu0 %v1733
        %1760 = vmatprep.subr.mxu0 %v1736
        %1761 = vmatpush1.msra.mxu0 %v1735
        %1762 = vmatprep.subr.mxu0 %v1738
        %1763 = vmatpush1.msra.mxu0 %v1737
        %1764 = vmatprep.subr.mxu0 %v1740
        %1765 = vmatpush1.msra.mxu0 %v1739
        %1766 = vmatprep.subr.mxu0 0.0
        %1767 = vmatpush1.msra.mxu0 0.0
        %1768 = vmatprep.subr.mxu0 0.0
        %1769 = vmatpush1.msra.mxu0 0.0
        %1770 = vmatprep.subr.mxu0 0.0
        %1771 = vmatpush1.msra.mxu0 0.0
        %1772 = vmatprep.subr.mxu0 0.0
        %1773 = vmatpush1.msra.mxu0 0.0
        %1774 = vmatprep.subr.mxu0 0.0
        %1775 = vmatpush1.msra.mxu0 0.0
        %1776 = vmatprep.subr.mxu0 0.0
        %1777 = vmatpush1.msra.mxu0 0.0
        %1778 = vmatprep.subr.mxu0 0.0
        %1779 = vmatpush1.msra.mxu0 0.0
        %1780 = vmatprep.subr.mxu0 0.0
        %1781 = vmatpush1.msra.mxu0 0.0
        %1782 = vmatprep.subr.mxu0 0.0
        %1783 = vmatpush1.msra.mxu0 0.0
        %1784 = vmatprep.subr.mxu0 0.0
        %1785 = vmatpush1.msra.mxu0 0.0
        %1786 = vmatprep.subr.mxu0 0.0
        %1787 = vmatpush1.msra.mxu0 0.0
        %1788 = vmatprep.subr.mxu0 0.0
        %1789 = vmatpush1.msra.mxu0 0.0
        %1790 = vmatprep.subr.mxu0 0.0
        %1791 = vmatpush1.msra.mxu0 0.0
        %1792 = vmatprep.subr.mxu0 0.0
        %1793 = vmatpush1.msra.mxu0 0.0
        %1794 = vmatprep.subr.mxu0 0.0
        %1795 = vmatpush1.msra.mxu0 0.0
        %1796 = vmatprep.subr.mxu0 0.0
        %1797 = vmatpush1.msra.mxu0 0.0
        %1798 = vmatprep.subr.mxu0 0.0
        %1799 = vmatpush1.msra.mxu0 0.0
        %1800 = vmatprep.subr.mxu0 0.0
        %1801 = vmatpush1.msra.mxu0 0.0
        %1802 = vmatprep.subr.mxu0 0.0
        %1803 = vmatpush1.msra.mxu0 0.0
        %1804 = vmatprep.subr.mxu0 0.0
        %1805 = vmatpush1.msra.mxu0 0.0
        %1806 = vmatprep.subr.mxu0 0.0
        %1807 = vmatpush1.msra.mxu0 0.0
        %1808 = vmatprep.subr.mxu0 0.0
        %1809 = vmatpush1.msra.mxu0 0.0
        %1810 = vmatprep.subr.mxu0 0.0
        %1811 = vmatpush1.msra.mxu0 0.0
        %1812 = vmatprep.subr.mxu0 0.0
        %1813 = vmatpush1.msra.mxu0 0.0
        %1814 = vmatprep.mubr.f32.mxu0 0.0
        %1815 = vmatmul.mubr.f32.gmra.mrb[0].mxu0 %v1748
        %v1816 = vpop.f32.mrb[0].mxu0
        %v1817 = vadd.f32 0.0, %v1816
        %v1818 = vpop.f32.mrb[0].mxu0
        %v1819 = vadd.f32 0.0, %v1818
        %1820 = vdwg.mxu0
        %v1821 = vlaneseq
        %v1822 = vshrl.u32 %v1821, 7
        %v1823 = vsub.s32 0, %v1822
        %v1824 = vrot.slane %v1538, %v1823
        %1826 = vbcast.lane.b32.xlu0 %v1824, 256
        %v1827 = vpop.permute.xlu0 %1826
        %s1829 = sor.u32 256, 8
        %1830 = vbcast.lane.b32.xlu0 %v1824, %s1829
        %v1831 = vpop.permute.xlu0 %1830
        %s1833 = sor.u32 256, 16
        %1834 = vbcast.lane.b32.xlu0 %v1824, %s1833
        %v1835 = vpop.permute.xlu0 %1834
        %s1837 = sor.u32 256, 24
        %1838 = vbcast.lane.b32.xlu0 %v1824, %s1837
        %v1839 = vpop.permute.xlu0 %1838
        %v1840 = vlaneseq
        %v1841 = vshrl.u32 %v1840, 7
        %v1842 = vsub.s32 1, %v1841
        %v1843 = vrot.slane %v1538, %v1842
        %1845 = vbcast.lane.b32.xlu0 %v1843, 256
        %v1846 = vpop.permute.xlu0 %1845
        %s1848 = sor.u32 256, 8
        %1849 = vbcast.lane.b32.xlu0 %v1843, %s1848
        %v1850 = vpop.permute.xlu0 %1849
        %s1852 = sor.u32 256, 16
        %1853 = vbcast.lane.b32.xlu0 %v1843, %s1852
        %v1854 = vpop.permute.xlu0 %1853
        %s1856 = sor.u32 256, 24
        %1857 = vbcast.lane.b32.xlu0 %v1843, %s1856
        %v1858 = vpop.permute.xlu0 %1857
        %v1859 = vlaneseq
        %v1860 = vshrl.u32 %v1859, 7
        %v1861 = vsub.s32 2, %v1860
        %v1862 = vrot.slane %v1538, %v1861
        %1864 = vbcast.lane.b32.xlu0 %v1862, 256
        %v1865 = vpop.permute.xlu0 %1864
        %s1867 = sor.u32 256, 8
        %1868 = vbcast.lane.b32.xlu0 %v1862, %s1867
        %v1869 = vpop.permute.xlu0 %1868
        %s1871 = sor.u32 256, 16
        %1872 = vbcast.lane.b32.xlu0 %v1862, %s1871
        %v1873 = vpop.permute.xlu0 %1872
        %s1875 = sor.u32 256, 24
        %1876 = vbcast.lane.b32.xlu0 %v1862, %s1875
        %v1877 = vpop.permute.xlu0 %1876
        %v1878 = vlaneseq
        %v1879 = vshrl.u32 %v1878, 7
        %v1880 = vsub.s32 3, %v1879
        %v1881 = vrot.slane %v1538, %v1880
        %1883 = vbcast.lane.b32.xlu0 %v1881, 256
        %v1884 = vpop.permute.xlu0 %1883
        %s1886 = sor.u32 256, 8
        %1887 = vbcast.lane.b32.xlu0 %v1881, %s1886
        %v1888 = vpop.permute.xlu0 %1887
        %s1890 = sor.u32 256, 16
        %1891 = vbcast.lane.b32.xlu0 %v1881, %s1890
        %v1892 = vpop.permute.xlu0 %1891
        %s1894 = sor.u32 256, 24
        %1895 = vbcast.lane.b32.xlu0 %v1881, %s1894
        %v1896 = vpop.permute.xlu0 %1895
        %v1897 = vmul.f32 %v352, %v1827
        %v1898 = vmul.f32 %v353, %v1827
        %v1899 = vmul.f32 %v354, %v1831
        %v1900 = vmul.f32 %v355, %v1831
        %v1901 = vmul.f32 %v356, %v1835
        %v1902 = vmul.f32 %v357, %v1835
        %v1903 = vmul.f32 %v358, %v1839
        %v1904 = vmul.f32 %v359, %v1839
        %v1905 = vmul.f32 %v360, %v1846
        %v1906 = vmul.f32 %v361, %v1846
        %v1907 = vmul.f32 %v362, %v1850
        %v1908 = vmul.f32 %v363, %v1850
        %v1909 = vmul.f32 %v364, %v1854
        %v1910 = vmul.f32 %v365, %v1854
        %v1911 = vmul.f32 %v366, %v1858
        %v1912 = vmul.f32 %v367, %v1858
        %v1913 = vmul.f32 %v368, %v1865
        %v1914 = vmul.f32 %v369, %v1865
        %v1915 = vmul.f32 %v370, %v1869
        %v1916 = vmul.f32 %v371, %v1869
        %v1917 = vmul.f32 %v372, %v1873
        %v1918 = vmul.f32 %v373, %v1873
        %v1919 = vmul.f32 %v374, %v1877
        %v1920 = vmul.f32 %v375, %v1877
        %v1921 = vmul.f32 %v376, %v1884
        %v1922 = vmul.f32 %v377, %v1884
        %v1923 = vmul.f32 %v378, %v1888
        %v1924 = vmul.f32 %v379, %v1888
        %v1925 = vmul.f32 %v380, %v1892
        %v1926 = vmul.f32 %v381, %v1892
        %v1927 = vmul.f32 %v382, %v1896
        %v1928 = vmul.f32 %v383, %v1896
        %v1931 = vcombine.low %v1817, %v1819
        %v1933 = vunpack.c.l.s4 1966171168
        %v1934 = vunpack.c.0.s8 %v1933
        %v1935 = vlaneseq
        %v1936 = vshrl.u32 %v1935, 7
        %v1937 = vsub.s32 %v1934, %v1936
        %v1938 = vrot.slane %v1931, %v1937
        %v1939 = vcombine.high %v1938, %v1938
        %v1941 = vunpack.c.l.s4 1966171168
        %v1942 = vunpack.c.0.s8 %v1941
        %v1943 = vlaneseq
        %v1944 = vshrl.u32 %v1943, 7
        %v1945 = vsub.s32 %v1942, %v1944
        %v1946 = vrot.slane %v1938, %v1945
        %v1948 = vunpack.c.l.s4 1966171168
        %v1949 = vunpack.c.0.s8 %v1948
        %v1950 = vlaneseq
        %v1951 = vshrl.u32 %v1950, 7
        %v1952 = vsub.s32 %v1949, %v1951
        %v1953 = vrot.slane %v1939, %v1952
        %v1954 = vcombine.high %v1946, %v1946
        %v1955 = vcombine.high %v1953, %v1953
        %v1956 = vlaneseq
        %v1957 = vshrl.u32 %v1956, 7
        %v1958 = vsub.s32 0, %v1957
        %v1959 = vrot.slane %v1946, %v1958
        %v1960 = vlaneseq
        %v1961 = vshrl.u32 %v1960, 7
        %v1962 = vsub.s32 1, %v1961
        %v1963 = vrot.slane %v1946, %v1962
        %v1964 = vlaneseq
        %v1965 = vshrl.u32 %v1964, 7
        %v1966 = vsub.s32 0, %v1965
        %v1967 = vrot.slane %v1953, %v1966
        %v1968 = vlaneseq
        %v1969 = vshrl.u32 %v1968, 7
        %v1970 = vsub.s32 1, %v1969
        %v1971 = vrot.slane %v1953, %v1970
        %v1972 = vlaneseq
        %v1973 = vshrl.u32 %v1972, 7
        %v1974 = vsub.s32 0, %v1973
        %v1975 = vrot.slane %v1954, %v1974
        %v1976 = vlaneseq
        %v1977 = vshrl.u32 %v1976, 7
        %v1978 = vsub.s32 1, %v1977
        %v1979 = vrot.slane %v1954, %v1978
        %v1980 = vlaneseq
        %v1981 = vshrl.u32 %v1980, 7
        %v1982 = vsub.s32 0, %v1981
        %v1983 = vrot.slane %v1955, %v1982
        %v1984 = vlaneseq
        %v1985 = vshrl.u32 %v1984, 7
        %v1986 = vsub.s32 1, %v1985
        %v1987 = vrot.slane %v1955, %v1986
        %v1996 = vmul.f32 %v1897, %v1959
        %v1997 = vmul.f32 %v1898, %v1963
        %v1998 = vmul.f32 %v1899, %v1959
        %v1999 = vmul.f32 %v1900, %v1963
        %v2000 = vmul.f32 %v1901, %v1959
        %v2001 = vmul.f32 %v1902, %v1963
        %v2002 = vmul.f32 %v1903, %v1959
        %v2003 = vmul.f32 %v1904, %v1963
        %v2004 = vmul.f32 %v1905, %v1967
        %v2005 = vmul.f32 %v1906, %v1971
        %v2006 = vmul.f32 %v1907, %v1967
        %v2007 = vmul.f32 %v1908, %v1971
        %v2008 = vmul.f32 %v1909, %v1967
        %v2009 = vmul.f32 %v1910, %v1971
        %v2010 = vmul.f32 %v1911, %v1967
        %v2011 = vmul.f32 %v1912, %v1971
        %v2012 = vmul.f32 %v1913, %v1975
        %v2013 = vmul.f32 %v1914, %v1979
        %v2014 = vmul.f32 %v1915, %v1975
        %v2015 = vmul.f32 %v1916, %v1979
        %v2016 = vmul.f32 %v1917, %v1975
        %v2017 = vmul.f32 %v1918, %v1979
        %v2018 = vmul.f32 %v1919, %v1975
        %v2019 = vmul.f32 %v1920, %v1979
        %v2020 = vmul.f32 %v1921, %v1983
        %v2021 = vmul.f32 %v1922, %v1987
        %v2022 = vmul.f32 %v1923, %v1983
        %v2023 = vmul.f32 %v1924, %v1987
        %v2024 = vmul.f32 %v1925, %v1983
        %v2025 = vmul.f32 %v1926, %v1987
        %v2026 = vmul.f32 %v1927, %v1983
        %v2027 = vmul.f32 %v1928, %v1987
        %2028 = vst [vmem:[%s343] sm:$0xff] %v1996
        %2029 = vst [vmem:[%s343 + $0x8] sm:$0xff] %v1997
        %2030 = vst [vmem:[%s343 + $0x10] sm:$0xff] %v1998
        %2031 = vst [vmem:[%s343 + $0x18] sm:$0xff] %v1999
        %2032 = vst [vmem:[%s343 + $0x20] sm:$0xff] %v2000
        %2033 = vst [vmem:[%s343 + $0x28] sm:$0xff] %v2001
        %2034 = vst [vmem:[%s343 + $0x30] sm:$0xff] %v2002
        %2035 = vst [vmem:[%s343 + $0x38] sm:$0xff] %v2003
        %2036 = vst [vmem:[%s343 + $0x40] sm:$0xff] %v2004
        %2037 = vst [vmem:[%s343 + $0x48] sm:$0xff] %v2005
        %2038 = vst [vmem:[%s343 + $0x50] sm:$0xff] %v2006
        %2039 = vst [vmem:[%s343 + $0x58] sm:$0xff] %v2007
        %2040 = vst [vmem:[%s343 + $0x60] sm:$0xff] %v2008
        %2041 = vst [vmem:[%s343 + $0x68] sm:$0xff] %v2009
        %2042 = vst [vmem:[%s343 + $0x70] sm:$0xff] %v2010
        %2043 = vst [vmem:[%s343 + $0x78] sm:$0xff] %v2011
        %2044 = vst [vmem:[%s343 + $0x80] sm:$0xff] %v2012
        %2045 = vst [vmem:[%s343 + $0x88] sm:$0xff] %v2013
        %2046 = vst [vmem:[%s343 + $0x90] sm:$0xff] %v2014
        %2047 = vst [vmem:[%s343 + $0x98] sm:$0xff] %v2015
        %2048 = vst [vmem:[%s343 + $0xa0] sm:$0xff] %v2016
        %2049 = vst [vmem:[%s343 + $0xa8] sm:$0xff] %v2017
        %2050 = vst [vmem:[%s343 + $0xb0] sm:$0xff] %v2018
        %2051 = vst [vmem:[%s343 + $0xb8] sm:$0xff] %v2019
        %2052 = vst [vmem:[%s343 + $0xc0] sm:$0xff] %v2020
        %2053 = vst [vmem:[%s343 + $0xc8] sm:$0xff] %v2021
        %2054 = vst [vmem:[%s343 + $0xd0] sm:$0xff] %v2022
        %2055 = vst [vmem:[%s343 + $0xd8] sm:$0xff] %v2023
        %2056 = vst [vmem:[%s343 + $0xe0] sm:$0xff] %v2024
        %2057 = vst [vmem:[%s343 + $0xe8] sm:$0xff] %v2025
        %2058 = vst [vmem:[%s343 + $0xf0] sm:$0xff] %v2026
        %2059 = vst [vmem:[%s343 + $0xf8] sm:$0xff] %v2027
        %s2060 = sand.u32 %s227, 1
        %s2061 = scalar_lea.sflag [#allocation4], %s2060
        %s2062 = sand.u32 %s227, 1
        %s2063 = smul.addr %s2062, 256
        %s2064 = scalar_lea.vmem [#allocation6], %s2063
        // Predicated region
        $region61: #{tpu_custom_call.1} parent=55 // pred_check
          %p2065 = pneg %p237
        $region62: #{tpu_custom_call.1} parent=55 // pred_check_branch
          %2067 = sbr.rel (%p2065) target = $region64
        $region63: #{tpu_custom_call.1} parent=55 // pred_region
          %s2068 = smul.u32 4, %s25
          %s2070 = ssub.s32 4096, 4096
          %2071 = vsyncadd %s2061, %s2070
          %s2072 = smul.addr %s2068, 8
          %s2073 = smul.addr %s2072, 128
          %s2074 = scalar_lea.hbm %s9, %s2073
          %s2075 = sshll.u32 %s2064, 4
          %s2076 = int_to_ptr.vmem [resolvable:$true] %s2075
          %2081 = dma.vmem_to_hbm [thread:$0]  %s2076, 4096, %s2074, %s2061, 256, 256, 16
        $region64: #{tpu_custom_call.1} parent=55 // pred_fallthru
          _
      $region56: #{tpu_custom_call.1} parent=5 // pred_fallthru
        _
      %p2082 = scmp.le.s32.totalorder 2, %s20
      // Predicated region
      $region65: #{tpu_custom_call.1} parent=5 // pred_check
        %p2083 = pneg %p2082
      $region66: #{tpu_custom_call.1} parent=5 // pred_check_branch
        %2085 = sbr.rel (%p2083) target = $region68
      $region67: #{tpu_custom_call.1} parent=5 // pred_region
        %s2086 = ssub.s32 %s20, 2
        // Predicated region
        $region69: #{tpu_custom_call.1} parent=67 // pred_check
          %p2087 = pneg %p243
        $region70: #{tpu_custom_call.1} parent=67 // pred_check_branch
          %2089 = sbr.rel (%p2087) target = $region72
        $region71: #{tpu_custom_call.1} parent=67 // pred_region
          %s2090 = sand.u32 %s228, 1
          %s2091 = scalar_lea.sflag [#allocation4], %s2090
          %s2092 = sand.u32 %s228, 1
          %s2093 = smul.addr %s2092, 256
          %s2094 = scalar_lea.vmem [#allocation6], %s2093
          %2095 = dma.done %s2091, 4096
        $region72: #{tpu_custom_call.1} parent=67 // pred_fallthru
          _
      $region68: #{tpu_custom_call.1} parent=5 // pred_fallthru
        _
    $region6: #{tpu_custom_call.1} parent=1 // loop_footer
      %s24 = sadd.s32 1, %s20
    $region7: #{tpu_custom_call.1} parent=1 // loop_footer_branch
      %19 = sbr.rel target = $region3
    $region8: #{tpu_custom_call.1} parent=1 // loop_exit
      _
    %2096 = vsyncpa [#allocation4], 1
    %s2097 = scalar_lea.sflag [#allocation4], 1
    %2098 = vsyncpa %s2097, 1
    %2099 = vsyncpa [#allocation5], 1
    %s2100 = scalar_lea.sflag [#allocation5], 1
    %2101 = vsyncpa %s2100, 1

</llo_original>
